<compile_context>
chip_gen: v5e
topology: v5e:2x2
jax: 0.10.0
libtpu: 0.0.40
codegen_flags: <defaults>
</compile_context>

<pallas_src>
import math
import jax
import jax.numpy as jnp
from jax.experimental import pallas as pl
from jax.experimental.pallas import tpu as pltpu  # noqa: F401  (per template)

# ---- scaled-down BERT config -------------------------------------------------
VOCAB = 100
TYPE_VOCAB = 2
MAX_POS = 16
B, S, H = 2, 8, 32          # batch, seq_len, hidden_size
N_HEADS = 4
D_HEAD = H // N_HEADS
INTER = 64                  # real intermediate (FFN) size
INTER_PAD = 128             # lane-padded FFN width (exact: padded cols are zero)
QKV_PAD = 128               # lane-aligned stride for the q / k / v output blocks
N_LAYERS = 2
N_CLASSES = 3
LN_EPS = 1e-12
LOGIT_PAD = 128             # lane-dense classifier width (sliced to N_CLASSES outside)
NEG_MASK = -10000.0         # BERT-style additive mask value


# ---- in-kernel helpers (all f32 elementwise math) ------------------------------
def _gelu(x):
    # tanh-approximation GELU (EUP-friendly); HF BERT's erf-GELU differs only ~1e-3.
    return 0.5 * x * (1.0 + jnp.tanh(0.7978845608028654 * (x + 0.044715 * x * x * x)))


def _layernorm(x, g, b):
    mu = jnp.mean(x, axis=-1, keepdims=True)
    var = jnp.mean((x - mu) ** 2, axis=-1, keepdims=True)
    return (x - mu) * jax.lax.rsqrt(var + LN_EPS) * g + b


# ---- the single fused forward kernel -------------------------------------------
def fused_forward_kernel(emb_ref, mask_ref, emb_g_ref, emb_b_ref,
                         wqkv_ref, bqkv_ref, wo_ref, bo_ref, g1_ref, be1_ref,
                         w1_ref, b1_ref, w2_ref, b2_ref, g2_ref, be2_ref,
                         wp_ref, bp_ref, wc_ref, bc_ref,
                         out_ref):
    scale = 1.0 / math.sqrt(D_HEAD)

    # Additive attention mask (padding + cross-batch blocking), built once in the
    # wrapper, loaded once here and reused across all layers/heads.
    mask = mask_ref[...]                                       # (B*S, B*S) f32

    # embedding LayerNorm; token-major activations x: (B*S, H), f32
    x = _layernorm(emb_ref[...], emb_g_ref[...], emb_b_ref[...])

    for l in range(N_LAYERS):            # static unroll; weights resident in VMEM
        # ---- fused token-major QKV projection: ONE lane-dense MXU push ----
        # qkv[token, feature] : (B*S, 3*QKV_PAD); q/k/v blocks at 128-aligned offsets.
        qkv = jnp.dot(x.astype(jnp.bfloat16), wqkv_ref[l],
                      preferred_element_type=jnp.float32) + bqkv_ref[l]
        qkv_bf = qkv.astype(jnp.bfloat16)

        # ---- attention: all B*S tokens at once per head (cross-batch masked) ----
        ctx_parts = []
        for n in range(N_HEADS):                               # static, N_HEADS = 4
            c = n * D_HEAD
            q_n = qkv_bf[:, 0 * QKV_PAD + c: 0 * QKV_PAD + c + D_HEAD]   # (B*S, d)
            k_n = qkv_bf[:, 1 * QKV_PAD + c: 1 * QKV_PAD + c + D_HEAD]
            v_n = qkv_bf[:, 2 * QKV_PAD + c: 2 * QKV_PAD + c + D_HEAD]

            # scores over ALL tokens; cross-batch / padded keys get -1e4 -> exp == 0,
            # so this equals independent per-batch softmax exactly.
            s = jnp.einsum('qd,kd->qk', q_n, k_n,
                           preferred_element_type=jnp.float32) * scale + mask
            s = s - jnp.max(s, axis=-1, keepdims=True)
            p = jnp.exp(s)
            p = p * pl.reciprocal(jnp.sum(p, axis=-1, keepdims=True), approx=True)

            ctx_parts.append(jnp.dot(p.astype(jnp.bfloat16), v_n,
                                     preferred_element_type=jnp.float32))  # (B*S, d)

        # head-major feature slab (B*S, H) -> ONE output-projection matmul
        ctx = jnp.concatenate(ctx_parts, axis=-1)
        attn = jnp.dot(ctx.astype(jnp.bfloat16), wo_ref[l],
                       preferred_element_type=jnp.float32) + bo_ref[l]

        # residual + LN, FFN (GELU, lane-padded to 128), residual + LN
        x1 = _layernorm(x + attn, g1_ref[l], be1_ref[l])
        hid = _gelu(jnp.dot(x1.astype(jnp.bfloat16), w1_ref[l],
                            preferred_element_type=jnp.float32) + b1_ref[l])
        ffn = jnp.dot(hid.astype(jnp.bfloat16), w2_ref[l],
                      preferred_element_type=jnp.float32) + b2_ref[l]
        x = _layernorm(x1 + ffn, g2_ref[l], be2_ref[l])

    # ---- pooler on [CLS] tokens (row b*S of the flat activations) ----
    cls = jnp.concatenate([x[b * S:b * S + 1, :] for b in range(B)], axis=0)   # (B, H)
    pooled = jnp.tanh(jnp.dot(cls.astype(jnp.bfloat16), wp_ref[...],
                              preferred_element_type=jnp.float32) + bp_ref[...])
    # nn.Dropout(p=0.3) is the identity in eval() / inference.
    # TODO(synk): training-mode stochastic dropout (pltpu PRNG) not implemented here.
    out_ref[...] = jnp.dot(pooled.astype(jnp.bfloat16), wc_ref[...],
                           preferred_element_type=jnp.float32) + bc_ref[...]   # (B, 128)


# ---- parameter initialization (deterministic, synthetic) ------------------------
def init_params(seed=0):
    key = jax.random.PRNGKey(seed)
    kit = iter(jax.random.split(key, 64))

    def w(shape):
        return 0.02 * jax.random.normal(next(kit), shape, jnp.float32)

    p = {}
    p["word_emb"] = w((VOCAB, H))
    p["pos_emb"] = w((MAX_POS, H))
    p["type_emb"] = w((TYPE_VOCAB, H))
    p["emb_g"] = jnp.ones((1, H), jnp.float32)
    p["emb_b"] = jnp.zeros((1, H), jnp.float32)

    wqkv, bqkv, wo, bo = [], [], [], []
    g1, be1, w1, b1, w2, b2, g2, be2 = [], [], [], [], [], [], [], []
    for _ in range(N_LAYERS):
        wq, wk, wv = w((H, H)), w((H, H)), w((H, H))     # (in, out); out is head-major
        # fused token-major QKV weight with q/k/v at 128-aligned lane offsets
        wqkv_l = (jnp.zeros((H, 3 * QKV_PAD), jnp.float32)
                  .at[:, 0 * QKV_PAD:0 * QKV_PAD + H].set(wq)
                  .at[:, 1 * QKV_PAD:1 * QKV_PAD + H].set(wk)
                  .at[:, 2 * QKV_PAD:2 * QKV_PAD + H].set(wv))
        wqkv.append(wqkv_l)
        bqkv.append(jnp.zeros((1, 3 * QKV_PAD), jnp.float32))
        wo.append(w((H, H)))                             # rows = head-major ctx features
        bo.append(jnp.zeros((1, H), jnp.float32))
        g1.append(jnp.ones((1, H), jnp.float32)); be1.append(jnp.zeros((1, H), jnp.float32))
        w1.append(jnp.zeros((H, INTER_PAD), jnp.float32).at[:, :INTER].set(w((H, INTER))))
        b1.append(jnp.zeros((1, INTER_PAD), jnp.float32))
        w2.append(jnp.zeros((INTER_PAD, H), jnp.float32).at[:INTER, :].set(w((INTER, H))))
        b2.append(jnp.zeros((1, H), jnp.float32))
        g2.append(jnp.ones((1, H), jnp.float32)); be2.append(jnp.zeros((1, H), jnp.float32))

    stack = lambda xs: jnp.stack(xs, axis=0)
    p["wqkv"] = stack(wqkv).astype(jnp.bfloat16)                   # (L, H, 3*128)
    p["bqkv"] = stack(bqkv)                                        # (L, 1, 3*128) f32
    p["wo"] = stack(wo).astype(jnp.bfloat16)                       # (L, H, H)
    p["bo"] = stack(bo)
    p["g1"], p["be1"] = stack(g1), stack(be1)
    p["w1"], p["b1"] = stack(w1).astype(jnp.bfloat16), stack(b1)   # (L, H, 128)
    p["w2"], p["b2"] = stack(w2).astype(jnp.bfloat16), stack(b2)   # (L, 128, H)
    p["g2"], p["be2"] = stack(g2), stack(be2)

    p["wp"] = w((H, H)).astype(jnp.bfloat16)                       # BERT pooler dense
    p["bp"] = jnp.zeros((1, H), jnp.float32)
    wc = w((H, N_CLASSES))                                         # classifier head
    p["wc"] = (jnp.zeros((H, LOGIT_PAD), jnp.float32)
               .at[:, :N_CLASSES].set(wc).astype(jnp.bfloat16))    # lane-padded
    p["bc"] = jnp.zeros((1, LOGIT_PAD), jnp.float32)
    return p


# ---- full forward pass: SentimentClassifier(input_ids, attention_mask) ----------
def sentiment_classifier_forward(params, input_ids, attention_mask):
    # embeddings (gather is glue in plain JAX); token_type_ids assumed all-zero.
    emb = (params["word_emb"][input_ids]
           + params["pos_emb"][jnp.arange(S)][None, :, :]
           + params["type_emb"][0][None, None, :])
    emb_flat = emb.reshape(B * S, H).astype(jnp.float32)

    # Combined additive mask (B*S, B*S): BERT padding mask (-1e4 on masked keys) plus
    # cross-batch blocking. Built ONCE here; reused across all layers/heads in-kernel.
    batch_ids = jnp.arange(B * S) // S
    same_batch = batch_ids[:, None] == batch_ids[None, :]
    key_valid = attention_mask.reshape(B * S).astype(bool)
    mask_full = jnp.where(same_batch & key_valid[None, :], 0.0, NEG_MASK
                          ).astype(jnp.float32)

    logits_pad = pl.pallas_call(
        fused_forward_kernel,
        out_shape=jax.ShapeDtypeStruct((B, LOGIT_PAD), jnp.float32),
    )(emb_flat, mask_full, params["emb_g"], params["emb_b"],
      params["wqkv"], params["bqkv"], params["wo"], params["bo"],
      params["g1"], params["be1"], params["w1"], params["b1"],
      params["w2"], params["b2"], params["g2"], params["be2"],
      params["wp"], params["bp"], params["wc"], params["bc"])
    return logits_pad[:, :N_CLASSES]


if __name__ == "__main__":
    key = jax.random.PRNGKey(0)
    k_ids, _ = jax.random.split(key)

    input_ids = jax.random.randint(k_ids, (B, S), 0, VOCAB, dtype=jnp.int32)
    attention_mask = jnp.array([[1, 1, 1, 1, 1, 1, 1, 1],
                                [1, 1, 1, 1, 1, 0, 0, 0]], dtype=jnp.int32)

    params = init_params(seed=0)
    fwd = jax.jit(sentiment_classifier_forward)
    logits = fwd(params, input_ids, attention_mask)
    jax.block_until_ready(logits)

    assert logits.shape == (B, N_CLASSES) and logits.dtype == jnp.float32
    assert bool(jnp.all(jnp.isfinite(logits)))
    print("KERNEL_OK")
</pallas_src>

<mosaic_0001>
module attributes {stable_mosaic.version = 11 : i64} {
  func.func @fused_forward_kernel(%arg0: memref<16x32xf32, #tpu.memory_space<vmem>>, %arg1: memref<16x16xf32, #tpu.memory_space<vmem>>, %arg2: memref<1x32xf32, #tpu.memory_space<vmem>>, %arg3: memref<1x32xf32, #tpu.memory_space<vmem>>, %arg4: memref<2x32x384xbf16, #tpu.memory_space<vmem>>, %arg5: memref<2x1x384xf32, #tpu.memory_space<vmem>>, %arg6: memref<2x32x32xbf16, #tpu.memory_space<vmem>>, %arg7: memref<2x1x32xf32, #tpu.memory_space<vmem>>, %arg8: memref<2x1x32xf32, #tpu.memory_space<vmem>>, %arg9: memref<2x1x32xf32, #tpu.memory_space<vmem>>, %arg10: memref<2x32x128xbf16, #tpu.memory_space<vmem>>, %arg11: memref<2x1x128xf32, #tpu.memory_space<vmem>>, %arg12: memref<2x128x32xbf16, #tpu.memory_space<vmem>>, %arg13: memref<2x1x32xf32, #tpu.memory_space<vmem>>, %arg14: memref<2x1x32xf32, #tpu.memory_space<vmem>>, %arg15: memref<2x1x32xf32, #tpu.memory_space<vmem>>, %arg16: memref<32x32xbf16, #tpu.memory_space<vmem>>, %arg17: memref<1x32xf32, #tpu.memory_space<vmem>>, %arg18: memref<32x128xbf16, #tpu.memory_space<vmem>>, %arg19: memref<1x128xf32, #tpu.memory_space<vmem>>, %arg20: memref<2x128xf32, #tpu.memory_space<vmem>>) attributes {dimension_semantics = [], scalar_prefetch = 0 : i64, scratch_operands = 0 : i64, tpu.core_type = #tpu.core_type<tc>} {
    %c0 = arith.constant 0 : index
    %c0_0 = arith.constant 0 : index
    %0 = vector.load %arg1[%c0, %c0_0] : memref<16x16xf32, #tpu.memory_space<vmem>>, vector<16x16xf32>
    %c0_1 = arith.constant 0 : index
    %c0_2 = arith.constant 0 : index
    %1 = vector.load %arg0[%c0_1, %c0_2] : memref<16x32xf32, #tpu.memory_space<vmem>>, vector<16x32xf32>
    %c0_3 = arith.constant 0 : index
    %c0_4 = arith.constant 0 : index
    %2 = vector.load %arg2[%c0_3, %c0_4] : memref<1x32xf32, #tpu.memory_space<vmem>>, vector<1x32xf32>
    %c0_5 = arith.constant 0 : index
    %c0_6 = arith.constant 0 : index
    %3 = vector.load %arg3[%c0_5, %c0_6] : memref<1x32xf32, #tpu.memory_space<vmem>>, vector<1x32xf32>
    %cst = arith.constant dense<0.000000e+00> : vector<16xf32>
    %4 = vector.multi_reduction <add>, %1, %cst [1] : vector<16x32xf32> to vector<16xf32>
    %5 = vector.shape_cast %4 : vector<16xf32> to vector<16x1xf32>
    %cst_7 = arith.constant 3.200000e+01 : f32
    %6 = vector.broadcast %cst_7 : f32 to vector<16x1xf32>
    %7 = arith.divf %5, %6 : vector<16x1xf32>
    %8 = vector.broadcast %7 : vector<16x1xf32> to vector<16x32xf32>
    %9 = arith.subf %1, %8 : vector<16x32xf32>
    %10 = arith.mulf %9, %9 : vector<16x32xf32>
    %cst_8 = arith.constant dense<0.000000e+00> : vector<16xf32>
    %11 = vector.multi_reduction <add>, %10, %cst_8 [1] : vector<16x32xf32> to vector<16xf32>
    %12 = vector.shape_cast %11 : vector<16xf32> to vector<16x1xf32>
    %cst_9 = arith.constant 3.200000e+01 : f32
    %13 = vector.broadcast %cst_9 : f32 to vector<16x1xf32>
    %14 = arith.divf %12, %13 : vector<16x1xf32>
    %15 = vector.broadcast %7 : vector<16x1xf32> to vector<16x32xf32>
    %16 = arith.subf %1, %15 : vector<16x32xf32>
    %cst_10 = arith.constant 9.99999996E-13 : f32
    %17 = vector.broadcast %cst_10 : f32 to vector<16x1xf32>
    %18 = arith.addf %14, %17 : vector<16x1xf32>
    %19 = math.rsqrt %18 : vector<16x1xf32>
    %20 = vector.broadcast %19 : vector<16x1xf32> to vector<16x32xf32>
    %21 = arith.mulf %16, %20 : vector<16x32xf32>
    %22 = vector.broadcast %2 : vector<1x32xf32> to vector<16x32xf32>
    %23 = arith.mulf %21, %22 : vector<16x32xf32>
    %24 = vector.broadcast %3 : vector<1x32xf32> to vector<16x32xf32>
    %25 = arith.addf %23, %24 : vector<16x32xf32>
    %26 = arith.truncf %25 : vector<16x32xf32> to vector<16x32xbf16>
    %c0_11 = arith.constant 0 : index
    %c0_12 = arith.constant 0 : index
    %c0_13 = arith.constant 0 : index
    %27 = vector.load %arg4[%c0_11, %c0_12, %c0_13] : memref<2x32x384xbf16, #tpu.memory_space<vmem>>, vector<1x32x384xbf16>
    %28 = vector.shape_cast %27 : vector<1x32x384xbf16> to vector<32x384xbf16>
    %cst_14 = arith.constant dense<0.000000e+00> : vector<16x384xf32>
    %29 = tpu.matmul %26, %28, %cst_14 {dimension_numbers = #tpu.dot_dimension_numbers<[1], [0], [0], [1], [0, 0, 1, 1], [], []>} : vector<16x32xbf16>, vector<32x384xbf16>, vector<16x384xf32> -> vector<16x384xf32>
    %c0_15 = arith.constant 0 : index
    %c0_16 = arith.constant 0 : index
    %c0_17 = arith.constant 0 : index
    %30 = vector.load %arg5[%c0_15, %c0_16, %c0_17] : memref<2x1x384xf32, #tpu.memory_space<vmem>>, vector<1x1x384xf32>
    %31 = vector.shape_cast %30 : vector<1x1x384xf32> to vector<1x384xf32>
    %32 = vector.broadcast %31 : vector<1x384xf32> to vector<16x384xf32>
    %33 = arith.addf %29, %32 : vector<16x384xf32>
    %34 = arith.truncf %33 : vector<16x384xf32> to vector<16x384xbf16>
    %35 = vector.extract_strided_slice %34 {offsets = [0, 0], sizes = [16, 8], strides = [1, 1]} : vector<16x384xbf16> to vector<16x8xbf16>
    %36 = vector.extract_strided_slice %34 {offsets = [0, 128], sizes = [16, 8], strides = [1, 1]} : vector<16x384xbf16> to vector<16x8xbf16>
    %37 = vector.extract_strided_slice %34 {offsets = [0, 256], sizes = [16, 8], strides = [1, 1]} : vector<16x384xbf16> to vector<16x8xbf16>
    "tpu.trace_start"() <{level = 10 : i32, message = "qd,kd->qk"}> : () -> ()
    %cst_18 = arith.constant dense<0.000000e+00> : vector<16x16xf32>
    %38 = tpu.matmul %35, %36, %cst_18 {dimension_numbers = #tpu.dot_dimension_numbers<[1], [1], [0], [0], [0, 0, 1, 0], [], []>} : vector<16x8xbf16>, vector<16x8xbf16>, vector<16x16xf32> -> vector<16x16xf32>
    "tpu.trace_stop"() : () -> ()
    %cst_19 = arith.constant 0.353553385 : f32
    %39 = vector.broadcast %cst_19 : f32 to vector<16x16xf32>
    %40 = arith.mulf %38, %39 : vector<16x16xf32>
    %41 = arith.addf %40, %0 : vector<16x16xf32>
    %cst_20 = arith.constant dense<0xFF800000> : vector<16xf32>
    %42 = vector.multi_reduction <maximumf>, %41, %cst_20 [1] : vector<16x16xf32> to vector<16xf32>
    %43 = vector.shape_cast %42 : vector<16xf32> to vector<16x1xf32>
    %44 = vector.broadcast %43 : vector<16x1xf32> to vector<16x16xf32>
    %45 = arith.subf %41, %44 : vector<16x16xf32>
    %46 = math.exp %45 : vector<16x16xf32>
    %cst_21 = arith.constant dense<0.000000e+00> : vector<16xf32>
    %47 = vector.multi_reduction <add>, %46, %cst_21 [1] : vector<16x16xf32> to vector<16xf32>
    %48 = vector.shape_cast %47 : vector<16xf32> to vector<16x1xf32>
    %49 = tpu.reciprocal %48 {approx = true} : vector<16x1xf32> -> vector<16x1xf32>
    %50 = vector.broadcast %49 : vector<16x1xf32> to vector<16x16xf32>
    %51 = arith.mulf %46, %50 : vector<16x16xf32>
    %52 = arith.truncf %51 : vector<16x16xf32> to vector<16x16xbf16>
    %cst_22 = arith.constant dense<0.000000e+00> : vector<16x8xf32>
    %53 = tpu.matmul %52, %37, %cst_22 {dimension_numbers = #tpu.dot_dimension_numbers<[1], [0], [0], [1], [0, 0, 1, 1], [], []>} : vector<16x16xbf16>, vector<16x8xbf16>, vector<16x8xf32> -> vector<16x8xf32>
    %54 = vector.extract_strided_slice %34 {offsets = [0, 8], sizes = [16, 8], strides = [1, 1]} : vector<16x384xbf16> to vector<16x8xbf16>
    %55 = vector.extract_strided_slice %34 {offsets = [0, 136], sizes = [16, 8], strides = [1, 1]} : vector<16x384xbf16> to vector<16x8xbf16>
    %56 = vector.extract_strided_slice %34 {offsets = [0, 264], sizes = [16, 8], strides = [1, 1]} : vector<16x384xbf16> to vector<16x8xbf16>
    "tpu.trace_start"() <{level = 10 : i32, message = "qd,kd->qk"}> : () -> ()
    %cst_23 = arith.constant dense<0.000000e+00> : vector<16x16xf32>
    %57 = tpu.matmul %54, %55, %cst_23 {dimension_numbers = #tpu.dot_dimension_numbers<[1], [1], [0], [0], [0, 0, 1, 0], [], []>} : vector<16x8xbf16>, vector<16x8xbf16>, vector<16x16xf32> -> vector<16x16xf32>
    "tpu.trace_stop"() : () -> ()
    %cst_24 = arith.constant 0.353553385 : f32
    %58 = vector.broadcast %cst_24 : f32 to vector<16x16xf32>
    %59 = arith.mulf %57, %58 : vector<16x16xf32>
    %60 = arith.addf %59, %0 : vector<16x16xf32>
    %cst_25 = arith.constant dense<0xFF800000> : vector<16xf32>
    %61 = vector.multi_reduction <maximumf>, %60, %cst_25 [1] : vector<16x16xf32> to vector<16xf32>
    %62 = vector.shape_cast %61 : vector<16xf32> to vector<16x1xf32>
    %63 = vector.broadcast %62 : vector<16x1xf32> to vector<16x16xf32>
    %64 = arith.subf %60, %63 : vector<16x16xf32>
    %65 = math.exp %64 : vector<16x16xf32>
    %cst_26 = arith.constant dense<0.000000e+00> : vector<16xf32>
    %66 = vector.multi_reduction <add>, %65, %cst_26 [1] : vector<16x16xf32> to vector<16xf32>
    %67 = vector.shape_cast %66 : vector<16xf32> to vector<16x1xf32>
    %68 = tpu.reciprocal %67 {approx = true} : vector<16x1xf32> -> vector<16x1xf32>
    %69 = vector.broadcast %68 : vector<16x1xf32> to vector<16x16xf32>
    %70 = arith.mulf %65, %69 : vector<16x16xf32>
    %71 = arith.truncf %70 : vector<16x16xf32> to vector<16x16xbf16>
    %cst_27 = arith.constant dense<0.000000e+00> : vector<16x8xf32>
    %72 = tpu.matmul %71, %56, %cst_27 {dimension_numbers = #tpu.dot_dimension_numbers<[1], [0], [0], [1], [0, 0, 1, 1], [], []>} : vector<16x16xbf16>, vector<16x8xbf16>, vector<16x8xf32> -> vector<16x8xf32>
    %73 = vector.extract_strided_slice %34 {offsets = [0, 16], sizes = [16, 8], strides = [1, 1]} : vector<16x384xbf16> to vector<16x8xbf16>
    %74 = vector.extract_strided_slice %34 {offsets = [0, 144], sizes = [16, 8], strides = [1, 1]} : vector<16x384xbf16> to vector<16x8xbf16>
    %75 = vector.extract_strided_slice %34 {offsets = [0, 272], sizes = [16, 8], strides = [1, 1]} : vector<16x384xbf16> to vector<16x8xbf16>
    "tpu.trace_start"() <{level = 10 : i32, message = "qd,kd->qk"}> : () -> ()
    %cst_28 = arith.constant dense<0.000000e+00> : vector<16x16xf32>
    %76 = tpu.matmul %73, %74, %cst_28 {dimension_numbers = #tpu.dot_dimension_numbers<[1], [1], [0], [0], [0, 0, 1, 0], [], []>} : vector<16x8xbf16>, vector<16x8xbf16>, vector<16x16xf32> -> vector<16x16xf32>
    "tpu.trace_stop"() : () -> ()
    %cst_29 = arith.constant 0.353553385 : f32
    %77 = vector.broadcast %cst_29 : f32 to vector<16x16xf32>
    %78 = arith.mulf %76, %77 : vector<16x16xf32>
    %79 = arith.addf %78, %0 : vector<16x16xf32>
    %cst_30 = arith.constant dense<0xFF800000> : vector<16xf32>
    %80 = vector.multi_reduction <maximumf>, %79, %cst_30 [1] : vector<16x16xf32> to vector<16xf32>
    %81 = vector.shape_cast %80 : vector<16xf32> to vector<16x1xf32>
    %82 = vector.broadcast %81 : vector<16x1xf32> to vector<16x16xf32>
    %83 = arith.subf %79, %82 : vector<16x16xf32>
    %84 = math.exp %83 : vector<16x16xf32>
    %cst_31 = arith.constant dense<0.000000e+00> : vector<16xf32>
    %85 = vector.multi_reduction <add>, %84, %cst_31 [1] : vector<16x16xf32> to vector<16xf32>
    %86 = vector.shape_cast %85 : vector<16xf32> to vector<16x1xf32>
    %87 = tpu.reciprocal %86 {approx = true} : vector<16x1xf32> -> vector<16x1xf32>
    %88 = vector.broadcast %87 : vector<16x1xf32> to vector<16x16xf32>
    %89 = arith.mulf %84, %88 : vector<16x16xf32>
    %90 = arith.truncf %89 : vector<16x16xf32> to vector<16x16xbf16>
    %cst_32 = arith.constant dense<0.000000e+00> : vector<16x8xf32>
    %91 = tpu.matmul %90, %75, %cst_32 {dimension_numbers = #tpu.dot_dimension_numbers<[1], [0], [0], [1], [0, 0, 1, 1], [], []>} : vector<16x16xbf16>, vector<16x8xbf16>, vector<16x8xf32> -> vector<16x8xf32>
    %92 = vector.extract_strided_slice %34 {offsets = [0, 24], sizes = [16, 8], strides = [1, 1]} : vector<16x384xbf16> to vector<16x8xbf16>
    %93 = vector.extract_strided_slice %34 {offsets = [0, 152], sizes = [16, 8], strides = [1, 1]} : vector<16x384xbf16> to vector<16x8xbf16>
    %94 = vector.extract_strided_slice %34 {offsets = [0, 280], sizes = [16, 8], strides = [1, 1]} : vector<16x384xbf16> to vector<16x8xbf16>
    "tpu.trace_start"() <{level = 10 : i32, message = "qd,kd->qk"}> : () -> ()
    %cst_33 = arith.constant dense<0.000000e+00> : vector<16x16xf32>
    %95 = tpu.matmul %92, %93, %cst_33 {dimension_numbers = #tpu.dot_dimension_numbers<[1], [1], [0], [0], [0, 0, 1, 0], [], []>} : vector<16x8xbf16>, vector<16x8xbf16>, vector<16x16xf32> -> vector<16x16xf32>
    "tpu.trace_stop"() : () -> ()
    %cst_34 = arith.constant 0.353553385 : f32
    %96 = vector.broadcast %cst_34 : f32 to vector<16x16xf32>
    %97 = arith.mulf %95, %96 : vector<16x16xf32>
    %98 = arith.addf %97, %0 : vector<16x16xf32>
    %cst_35 = arith.constant dense<0xFF800000> : vector<16xf32>
    %99 = vector.multi_reduction <maximumf>, %98, %cst_35 [1] : vector<16x16xf32> to vector<16xf32>
    %100 = vector.shape_cast %99 : vector<16xf32> to vector<16x1xf32>
    %101 = vector.broadcast %100 : vector<16x1xf32> to vector<16x16xf32>
    %102 = arith.subf %98, %101 : vector<16x16xf32>
    %103 = math.exp %102 : vector<16x16xf32>
    %cst_36 = arith.constant dense<0.000000e+00> : vector<16xf32>
    %104 = vector.multi_reduction <add>, %103, %cst_36 [1] : vector<16x16xf32> to vector<16xf32>
    %105 = vector.shape_cast %104 : vector<16xf32> to vector<16x1xf32>
    %106 = tpu.reciprocal %105 {approx = true} : vector<16x1xf32> -> vector<16x1xf32>
    %107 = vector.broadcast %106 : vector<16x1xf32> to vector<16x16xf32>
    %108 = arith.mulf %103, %107 : vector<16x16xf32>
    %109 = arith.truncf %108 : vector<16x16xf32> to vector<16x16xbf16>
    %cst_37 = arith.constant dense<0.000000e+00> : vector<16x8xf32>
    %110 = tpu.matmul %109, %94, %cst_37 {dimension_numbers = #tpu.dot_dimension_numbers<[1], [0], [0], [1], [0, 0, 1, 1], [], []>} : vector<16x16xbf16>, vector<16x8xbf16>, vector<16x8xf32> -> vector<16x8xf32>
    %111 = tpu.concatenate %53, %72, %91, %110 in 1 : vector<16x8xf32>, vector<16x8xf32>, vector<16x8xf32>, vector<16x8xf32> -> vector<16x32xf32>
    %112 = arith.truncf %111 : vector<16x32xf32> to vector<16x32xbf16>
    %c0_38 = arith.constant 0 : index
    %c0_39 = arith.constant 0 : index
    %c0_40 = arith.constant 0 : index
    %113 = vector.load %arg6[%c0_38, %c0_39, %c0_40] : memref<2x32x32xbf16, #tpu.memory_space<vmem>>, vector<1x32x32xbf16>
    %114 = vector.shape_cast %113 : vector<1x32x32xbf16> to vector<32x32xbf16>
    %cst_41 = arith.constant dense<0.000000e+00> : vector<16x32xf32>
    %115 = tpu.matmul %112, %114, %cst_41 {dimension_numbers = #tpu.dot_dimension_numbers<[1], [0], [0], [1], [0, 0, 1, 1], [], []>} : vector<16x32xbf16>, vector<32x32xbf16>, vector<16x32xf32> -> vector<16x32xf32>
    %c0_42 = arith.constant 0 : index
    %c0_43 = arith.constant 0 : index
    %c0_44 = arith.constant 0 : index
    %116 = vector.load %arg7[%c0_42, %c0_43, %c0_44] : memref<2x1x32xf32, #tpu.memory_space<vmem>>, vector<1x1x32xf32>
    %117 = vector.shape_cast %116 : vector<1x1x32xf32> to vector<1x32xf32>
    %118 = vector.broadcast %117 : vector<1x32xf32> to vector<16x32xf32>
    %119 = arith.addf %115, %118 : vector<16x32xf32>
    %120 = arith.addf %25, %119 : vector<16x32xf32>
    %c0_45 = arith.constant 0 : index
    %c0_46 = arith.constant 0 : index
    %c0_47 = arith.constant 0 : index
    %121 = vector.load %arg8[%c0_45, %c0_46, %c0_47] : memref<2x1x32xf32, #tpu.memory_space<vmem>>, vector<1x1x32xf32>
    %122 = vector.shape_cast %121 : vector<1x1x32xf32> to vector<1x32xf32>
    %c0_48 = arith.constant 0 : index
    %c0_49 = arith.constant 0 : index
    %c0_50 = arith.constant 0 : index
    %123 = vector.load %arg9[%c0_48, %c0_49, %c0_50] : memref<2x1x32xf32, #tpu.memory_space<vmem>>, vector<1x1x32xf32>
    %124 = vector.shape_cast %123 : vector<1x1x32xf32> to vector<1x32xf32>
    %cst_51 = arith.constant dense<0.000000e+00> : vector<16xf32>
    %125 = vector.multi_reduction <add>, %120, %cst_51 [1] : vector<16x32xf32> to vector<16xf32>
    %126 = vector.shape_cast %125 : vector<16xf32> to vector<16x1xf32>
    %cst_52 = arith.constant 3.200000e+01 : f32
    %127 = vector.broadcast %cst_52 : f32 to vector<16x1xf32>
    %128 = arith.divf %126, %127 : vector<16x1xf32>
    %129 = vector.broadcast %128 : vector<16x1xf32> to vector<16x32xf32>
    %130 = arith.subf %120, %129 : vector<16x32xf32>
    %131 = arith.mulf %130, %130 : vector<16x32xf32>
    %cst_53 = arith.constant dense<0.000000e+00> : vector<16xf32>
    %132 = vector.multi_reduction <add>, %131, %cst_53 [1] : vector<16x32xf32> to vector<16xf32>
    %133 = vector.shape_cast %132 : vector<16xf32> to vector<16x1xf32>
    %cst_54 = arith.constant 3.200000e+01 : f32
    %134 = vector.broadcast %cst_54 : f32 to vector<16x1xf32>
    %135 = arith.divf %133, %134 : vector<16x1xf32>
    %136 = vector.broadcast %128 : vector<16x1xf32> to vector<16x32xf32>
    %137 = arith.subf %120, %136 : vector<16x32xf32>
    %cst_55 = arith.constant 9.99999996E-13 : f32
    %138 = vector.broadcast %cst_55 : f32 to vector<16x1xf32>
    %139 = arith.addf %135, %138 : vector<16x1xf32>
    %140 = math.rsqrt %139 : vector<16x1xf32>
    %141 = vector.broadcast %140 : vector<16x1xf32> to vector<16x32xf32>
    %142 = arith.mulf %137, %141 : vector<16x32xf32>
    %143 = vector.broadcast %122 : vector<1x32xf32> to vector<16x32xf32>
    %144 = arith.mulf %142, %143 : vector<16x32xf32>
    %145 = vector.broadcast %124 : vector<1x32xf32> to vector<16x32xf32>
    %146 = arith.addf %144, %145 : vector<16x32xf32>
    %147 = arith.truncf %146 : vector<16x32xf32> to vector<16x32xbf16>
    %c0_56 = arith.constant 0 : index
    %c0_57 = arith.constant 0 : index
    %c0_58 = arith.constant 0 : index
    %148 = vector.load %arg10[%c0_56, %c0_57, %c0_58] : memref<2x32x128xbf16, #tpu.memory_space<vmem>>, vector<1x32x128xbf16>
    %149 = vector.shape_cast %148 : vector<1x32x128xbf16> to vector<32x128xbf16>
    %cst_59 = arith.constant dense<0.000000e+00> : vector<16x128xf32>
    %150 = tpu.matmul %147, %149, %cst_59 {dimension_numbers = #tpu.dot_dimension_numbers<[1], [0], [0], [1], [0, 0, 1, 1], [], []>} : vector<16x32xbf16>, vector<32x128xbf16>, vector<16x128xf32> -> vector<16x128xf32>
    %c0_60 = arith.constant 0 : index
    %c0_61 = arith.constant 0 : index
    %c0_62 = arith.constant 0 : index
    %151 = vector.load %arg11[%c0_60, %c0_61, %c0_62] : memref<2x1x128xf32, #tpu.memory_space<vmem>>, vector<1x1x128xf32>
    %152 = vector.shape_cast %151 : vector<1x1x128xf32> to vector<1x128xf32>
    %153 = vector.broadcast %152 : vector<1x128xf32> to vector<16x128xf32>
    %154 = arith.addf %150, %153 : vector<16x128xf32>
    %cst_63 = arith.constant 5.000000e-01 : f32
    %155 = vector.broadcast %cst_63 : f32 to vector<16x128xf32>
    %156 = arith.mulf %155, %154 : vector<16x128xf32>
    %cst_64 = arith.constant 4.471500e-02 : f32
    %157 = vector.broadcast %cst_64 : f32 to vector<16x128xf32>
    %158 = arith.mulf %157, %154 : vector<16x128xf32>
    %159 = arith.mulf %158, %154 : vector<16x128xf32>
    %160 = arith.mulf %159, %154 : vector<16x128xf32>
    %161 = arith.addf %154, %160 : vector<16x128xf32>
    %cst_65 = arith.constant 0.797884583 : f32
    %162 = vector.broadcast %cst_65 : f32 to vector<16x128xf32>
    %163 = arith.mulf %162, %161 : vector<16x128xf32>
    %164 = math.tanh %163 : vector<16x128xf32>
    %cst_66 = arith.constant 1.000000e+00 : f32
    %165 = vector.broadcast %cst_66 : f32 to vector<16x128xf32>
    %166 = arith.addf %165, %164 : vector<16x128xf32>
    %167 = arith.mulf %156, %166 : vector<16x128xf32>
    %168 = arith.truncf %167 : vector<16x128xf32> to vector<16x128xbf16>
    %c0_67 = arith.constant 0 : index
    %c0_68 = arith.constant 0 : index
    %c0_69 = arith.constant 0 : index
    %169 = vector.load %arg12[%c0_67, %c0_68, %c0_69] : memref<2x128x32xbf16, #tpu.memory_space<vmem>>, vector<1x128x32xbf16>
    %170 = vector.shape_cast %169 : vector<1x128x32xbf16> to vector<128x32xbf16>
    %cst_70 = arith.constant dense<0.000000e+00> : vector<16x32xf32>
    %171 = tpu.matmul %168, %170, %cst_70 {dimension_numbers = #tpu.dot_dimension_numbers<[1], [0], [0], [1], [0, 0, 1, 1], [], []>} : vector<16x128xbf16>, vector<128x32xbf16>, vector<16x32xf32> -> vector<16x32xf32>
    %c0_71 = arith.constant 0 : index
    %c0_72 = arith.constant 0 : index
    %c0_73 = arith.constant 0 : index
    %172 = vector.load %arg13[%c0_71, %c0_72, %c0_73] : memref<2x1x32xf32, #tpu.memory_space<vmem>>, vector<1x1x32xf32>
    %173 = vector.shape_cast %172 : vector<1x1x32xf32> to vector<1x32xf32>
    %174 = vector.broadcast %173 : vector<1x32xf32> to vector<16x32xf32>
    %175 = arith.addf %171, %174 : vector<16x32xf32>
    %176 = arith.addf %146, %175 : vector<16x32xf32>
    %c0_74 = arith.constant 0 : index
    %c0_75 = arith.constant 0 : index
    %c0_76 = arith.constant 0 : index
    %177 = vector.load %arg14[%c0_74, %c0_75, %c0_76] : memref<2x1x32xf32, #tpu.memory_space<vmem>>, vector<1x1x32xf32>
    %178 = vector.shape_cast %177 : vector<1x1x32xf32> to vector<1x32xf32>
    %c0_77 = arith.constant 0 : index
    %c0_78 = arith.constant 0 : index
    %c0_79 = arith.constant 0 : index
    %179 = vector.load %arg15[%c0_77, %c0_78, %c0_79] : memref<2x1x32xf32, #tpu.memory_space<vmem>>, vector<1x1x32xf32>
    %180 = vector.shape_cast %179 : vector<1x1x32xf32> to vector<1x32xf32>
    %cst_80 = arith.constant dense<0.000000e+00> : vector<16xf32>
    %181 = vector.multi_reduction <add>, %176, %cst_80 [1] : vector<16x32xf32> to vector<16xf32>
    %182 = vector.shape_cast %181 : vector<16xf32> to vector<16x1xf32>
    %cst_81 = arith.constant 3.200000e+01 : f32
    %183 = vector.broadcast %cst_81 : f32 to vector<16x1xf32>
    %184 = arith.divf %182, %183 : vector<16x1xf32>
    %185 = vector.broadcast %184 : vector<16x1xf32> to vector<16x32xf32>
    %186 = arith.subf %176, %185 : vector<16x32xf32>
    %187 = arith.mulf %186, %186 : vector<16x32xf32>
    %cst_82 = arith.constant dense<0.000000e+00> : vector<16xf32>
    %188 = vector.multi_reduction <add>, %187, %cst_82 [1] : vector<16x32xf32> to vector<16xf32>
    %189 = vector.shape_cast %188 : vector<16xf32> to vector<16x1xf32>
    %cst_83 = arith.constant 3.200000e+01 : f32
    %190 = vector.broadcast %cst_83 : f32 to vector<16x1xf32>
    %191 = arith.divf %189, %190 : vector<16x1xf32>
    %192 = vector.broadcast %184 : vector<16x1xf32> to vector<16x32xf32>
    %193 = arith.subf %176, %192 : vector<16x32xf32>
    %cst_84 = arith.constant 9.99999996E-13 : f32
    %194 = vector.broadcast %cst_84 : f32 to vector<16x1xf32>
    %195 = arith.addf %191, %194 : vector<16x1xf32>
    %196 = math.rsqrt %195 : vector<16x1xf32>
    %197 = vector.broadcast %196 : vector<16x1xf32> to vector<16x32xf32>
    %198 = arith.mulf %193, %197 : vector<16x32xf32>
    %199 = vector.broadcast %178 : vector<1x32xf32> to vector<16x32xf32>
    %200 = arith.mulf %198, %199 : vector<16x32xf32>
    %201 = vector.broadcast %180 : vector<1x32xf32> to vector<16x32xf32>
    %202 = arith.addf %200, %201 : vector<16x32xf32>
    %203 = arith.truncf %202 : vector<16x32xf32> to vector<16x32xbf16>
    %c1 = arith.constant 1 : index
    %c0_85 = arith.constant 0 : index
    %c0_86 = arith.constant 0 : index
    %204 = vector.load %arg4[%c1, %c0_85, %c0_86] : memref<2x32x384xbf16, #tpu.memory_space<vmem>>, vector<1x32x384xbf16>
    %205 = vector.shape_cast %204 : vector<1x32x384xbf16> to vector<32x384xbf16>
    %cst_87 = arith.constant dense<0.000000e+00> : vector<16x384xf32>
    %206 = tpu.matmul %203, %205, %cst_87 {dimension_numbers = #tpu.dot_dimension_numbers<[1], [0], [0], [1], [0, 0, 1, 1], [], []>} : vector<16x32xbf16>, vector<32x384xbf16>, vector<16x384xf32> -> vector<16x384xf32>
    %c1_88 = arith.constant 1 : index
    %c0_89 = arith.constant 0 : index
    %c0_90 = arith.constant 0 : index
    %207 = vector.load %arg5[%c1_88, %c0_89, %c0_90] : memref<2x1x384xf32, #tpu.memory_space<vmem>>, vector<1x1x384xf32>
    %208 = vector.shape_cast %207 : vector<1x1x384xf32> to vector<1x384xf32>
    %209 = vector.broadcast %208 : vector<1x384xf32> to vector<16x384xf32>
    %210 = arith.addf %206, %209 : vector<16x384xf32>
    %211 = arith.truncf %210 : vector<16x384xf32> to vector<16x384xbf16>
    %212 = vector.extract_strided_slice %211 {offsets = [0, 0], sizes = [16, 8], strides = [1, 1]} : vector<16x384xbf16> to vector<16x8xbf16>
    %213 = vector.extract_strided_slice %211 {offsets = [0, 128], sizes = [16, 8], strides = [1, 1]} : vector<16x384xbf16> to vector<16x8xbf16>
    %214 = vector.extract_strided_slice %211 {offsets = [0, 256], sizes = [16, 8], strides = [1, 1]} : vector<16x384xbf16> to vector<16x8xbf16>
    "tpu.trace_start"() <{level = 10 : i32, message = "qd,kd->qk"}> : () -> ()
    %cst_91 = arith.constant dense<0.000000e+00> : vector<16x16xf32>
    %215 = tpu.matmul %212, %213, %cst_91 {dimension_numbers = #tpu.dot_dimension_numbers<[1], [1], [0], [0], [0, 0, 1, 0], [], []>} : vector<16x8xbf16>, vector<16x8xbf16>, vector<16x16xf32> -> vector<16x16xf32>
    "tpu.trace_stop"() : () -> ()
    %cst_92 = arith.constant 0.353553385 : f32
    %216 = vector.broadcast %cst_92 : f32 to vector<16x16xf32>
    %217 = arith.mulf %215, %216 : vector<16x16xf32>
    %218 = arith.addf %217, %0 : vector<16x16xf32>
    %cst_93 = arith.constant dense<0xFF800000> : vector<16xf32>
    %219 = vector.multi_reduction <maximumf>, %218, %cst_93 [1] : vector<16x16xf32> to vector<16xf32>
    %220 = vector.shape_cast %219 : vector<16xf32> to vector<16x1xf32>
    %221 = vector.broadcast %220 : vector<16x1xf32> to vector<16x16xf32>
    %222 = arith.subf %218, %221 : vector<16x16xf32>
    %223 = math.exp %222 : vector<16x16xf32>
    %cst_94 = arith.constant dense<0.000000e+00> : vector<16xf32>
    %224 = vector.multi_reduction <add>, %223, %cst_94 [1] : vector<16x16xf32> to vector<16xf32>
    %225 = vector.shape_cast %224 : vector<16xf32> to vector<16x1xf32>
    %226 = tpu.reciprocal %225 {approx = true} : vector<16x1xf32> -> vector<16x1xf32>
    %227 = vector.broadcast %226 : vector<16x1xf32> to vector<16x16xf32>
    %228 = arith.mulf %223, %227 : vector<16x16xf32>
    %229 = arith.truncf %228 : vector<16x16xf32> to vector<16x16xbf16>
    %cst_95 = arith.constant dense<0.000000e+00> : vector<16x8xf32>
    %230 = tpu.matmul %229, %214, %cst_95 {dimension_numbers = #tpu.dot_dimension_numbers<[1], [0], [0], [1], [0, 0, 1, 1], [], []>} : vector<16x16xbf16>, vector<16x8xbf16>, vector<16x8xf32> -> vector<16x8xf32>
    %231 = vector.extract_strided_slice %211 {offsets = [0, 8], sizes = [16, 8], strides = [1, 1]} : vector<16x384xbf16> to vector<16x8xbf16>
    %232 = vector.extract_strided_slice %211 {offsets = [0, 136], sizes = [16, 8], strides = [1, 1]} : vector<16x384xbf16> to vector<16x8xbf16>
    %233 = vector.extract_strided_slice %211 {offsets = [0, 264], sizes = [16, 8], strides = [1, 1]} : vector<16x384xbf16> to vector<16x8xbf16>
    "tpu.trace_start"() <{level = 10 : i32, message = "qd,kd->qk"}> : () -> ()
    %cst_96 = arith.constant dense<0.000000e+00> : vector<16x16xf32>
    %234 = tpu.matmul %231, %232, %cst_96 {dimension_numbers = #tpu.dot_dimension_numbers<[1], [1], [0], [0], [0, 0, 1, 0], [], []>} : vector<16x8xbf16>, vector<16x8xbf16>, vector<16x16xf32> -> vector<16x16xf32>
    "tpu.trace_stop"() : () -> ()
    %cst_97 = arith.constant 0.353553385 : f32
    %235 = vector.broadcast %cst_97 : f32 to vector<16x16xf32>
    %236 = arith.mulf %234, %235 : vector<16x16xf32>
    %237 = arith.addf %236, %0 : vector<16x16xf32>
    %cst_98 = arith.constant dense<0xFF800000> : vector<16xf32>
    %238 = vector.multi_reduction <maximumf>, %237, %cst_98 [1] : vector<16x16xf32> to vector<16xf32>
    %239 = vector.shape_cast %238 : vector<16xf32> to vector<16x1xf32>
    %240 = vector.broadcast %239 : vector<16x1xf32> to vector<16x16xf32>
    %241 = arith.subf %237, %240 : vector<16x16xf32>
    %242 = math.exp %241 : vector<16x16xf32>
    %cst_99 = arith.constant dense<0.000000e+00> : vector<16xf32>
    %243 = vector.multi_reduction <add>, %242, %cst_99 [1] : vector<16x16xf32> to vector<16xf32>
    %244 = vector.shape_cast %243 : vector<16xf32> to vector<16x1xf32>
    %245 = tpu.reciprocal %244 {approx = true} : vector<16x1xf32> -> vector<16x1xf32>
    %246 = vector.broadcast %245 : vector<16x1xf32> to vector<16x16xf32>
    %247 = arith.mulf %242, %246 : vector<16x16xf32>
    %248 = arith.truncf %247 : vector<16x16xf32> to vector<16x16xbf16>
    %cst_100 = arith.constant dense<0.000000e+00> : vector<16x8xf32>
    %249 = tpu.matmul %248, %233, %cst_100 {dimension_numbers = #tpu.dot_dimension_numbers<[1], [0], [0], [1], [0, 0, 1, 1], [], []>} : vector<16x16xbf16>, vector<16x8xbf16>, vector<16x8xf32> -> vector<16x8xf32>
    %250 = vector.extract_strided_slice %211 {offsets = [0, 16], sizes = [16, 8], strides = [1, 1]} : vector<16x384xbf16> to vector<16x8xbf16>
    %251 = vector.extract_strided_slice %211 {offsets = [0, 144], sizes = [16, 8], strides = [1, 1]} : vector<16x384xbf16> to vector<16x8xbf16>
    %252 = vector.extract_strided_slice %211 {offsets = [0, 272], sizes = [16, 8], strides = [1, 1]} : vector<16x384xbf16> to vector<16x8xbf16>
    "tpu.trace_start"() <{level = 10 : i32, message = "qd,kd->qk"}> : () -> ()
    %cst_101 = arith.constant dense<0.000000e+00> : vector<16x16xf32>
    %253 = tpu.matmul %250, %251, %cst_101 {dimension_numbers = #tpu.dot_dimension_numbers<[1], [1], [0], [0], [0, 0, 1, 0], [], []>} : vector<16x8xbf16>, vector<16x8xbf16>, vector<16x16xf32> -> vector<16x16xf32>
    "tpu.trace_stop"() : () -> ()
    %cst_102 = arith.constant 0.353553385 : f32
    %254 = vector.broadcast %cst_102 : f32 to vector<16x16xf32>
    %255 = arith.mulf %253, %254 : vector<16x16xf32>
    %256 = arith.addf %255, %0 : vector<16x16xf32>
    %cst_103 = arith.constant dense<0xFF800000> : vector<16xf32>
    %257 = vector.multi_reduction <maximumf>, %256, %cst_103 [1] : vector<16x16xf32> to vector<16xf32>
    %258 = vector.shape_cast %257 : vector<16xf32> to vector<16x1xf32>
    %259 = vector.broadcast %258 : vector<16x1xf32> to vector<16x16xf32>
    %260 = arith.subf %256, %259 : vector<16x16xf32>
    %261 = math.exp %260 : vector<16x16xf32>
    %cst_104 = arith.constant dense<0.000000e+00> : vector<16xf32>
    %262 = vector.multi_reduction <add>, %261, %cst_104 [1] : vector<16x16xf32> to vector<16xf32>
    %263 = vector.shape_cast %262 : vector<16xf32> to vector<16x1xf32>
    %264 = tpu.reciprocal %263 {approx = true} : vector<16x1xf32> -> vector<16x1xf32>
    %265 = vector.broadcast %264 : vector<16x1xf32> to vector<16x16xf32>
    %266 = arith.mulf %261, %265 : vector<16x16xf32>
    %267 = arith.truncf %266 : vector<16x16xf32> to vector<16x16xbf16>
    %cst_105 = arith.constant dense<0.000000e+00> : vector<16x8xf32>
    %268 = tpu.matmul %267, %252, %cst_105 {dimension_numbers = #tpu.dot_dimension_numbers<[1], [0], [0], [1], [0, 0, 1, 1], [], []>} : vector<16x16xbf16>, vector<16x8xbf16>, vector<16x8xf32> -> vector<16x8xf32>
    %269 = vector.extract_strided_slice %211 {offsets = [0, 24], sizes = [16, 8], strides = [1, 1]} : vector<16x384xbf16> to vector<16x8xbf16>
    %270 = vector.extract_strided_slice %211 {offsets = [0, 152], sizes = [16, 8], strides = [1, 1]} : vector<16x384xbf16> to vector<16x8xbf16>
    %271 = vector.extract_strided_slice %211 {offsets = [0, 280], sizes = [16, 8], strides = [1, 1]} : vector<16x384xbf16> to vector<16x8xbf16>
    "tpu.trace_start"() <{level = 10 : i32, message = "qd,kd->qk"}> : () -> ()
    %cst_106 = arith.constant dense<0.000000e+00> : vector<16x16xf32>
    %272 = tpu.matmul %269, %270, %cst_106 {dimension_numbers = #tpu.dot_dimension_numbers<[1], [1], [0], [0], [0, 0, 1, 0], [], []>} : vector<16x8xbf16>, vector<16x8xbf16>, vector<16x16xf32> -> vector<16x16xf32>
    "tpu.trace_stop"() : () -> ()
    %cst_107 = arith.constant 0.353553385 : f32
    %273 = vector.broadcast %cst_107 : f32 to vector<16x16xf32>
    %274 = arith.mulf %272, %273 : vector<16x16xf32>
    %275 = arith.addf %274, %0 : vector<16x16xf32>
    %cst_108 = arith.constant dense<0xFF800000> : vector<16xf32>
    %276 = vector.multi_reduction <maximumf>, %275, %cst_108 [1] : vector<16x16xf32> to vector<16xf32>
    %277 = vector.shape_cast %276 : vector<16xf32> to vector<16x1xf32>
    %278 = vector.broadcast %277 : vector<16x1xf32> to vector<16x16xf32>
    %279 = arith.subf %275, %278 : vector<16x16xf32>
    %280 = math.exp %279 : vector<16x16xf32>
    %cst_109 = arith.constant dense<0.000000e+00> : vector<16xf32>
    %281 = vector.multi_reduction <add>, %280, %cst_109 [1] : vector<16x16xf32> to vector<16xf32>
    %282 = vector.shape_cast %281 : vector<16xf32> to vector<16x1xf32>
    %283 = tpu.reciprocal %282 {approx = true} : vector<16x1xf32> -> vector<16x1xf32>
    %284 = vector.broadcast %283 : vector<16x1xf32> to vector<16x16xf32>
    %285 = arith.mulf %280, %284 : vector<16x16xf32>
    %286 = arith.truncf %285 : vector<16x16xf32> to vector<16x16xbf16>
    %cst_110 = arith.constant dense<0.000000e+00> : vector<16x8xf32>
    %287 = tpu.matmul %286, %271, %cst_110 {dimension_numbers = #tpu.dot_dimension_numbers<[1], [0], [0], [1], [0, 0, 1, 1], [], []>} : vector<16x16xbf16>, vector<16x8xbf16>, vector<16x8xf32> -> vector<16x8xf32>
    %288 = tpu.concatenate %230, %249, %268, %287 in 1 : vector<16x8xf32>, vector<16x8xf32>, vector<16x8xf32>, vector<16x8xf32> -> vector<16x32xf32>
    %289 = arith.truncf %288 : vector<16x32xf32> to vector<16x32xbf16>
    %c1_111 = arith.constant 1 : index
    %c0_112 = arith.constant 0 : index
    %c0_113 = arith.constant 0 : index
    %290 = vector.load %arg6[%c1_111, %c0_112, %c0_113] : memref<2x32x32xbf16, #tpu.memory_space<vmem>>, vector<1x32x32xbf16>
    %291 = vector.shape_cast %290 : vector<1x32x32xbf16> to vector<32x32xbf16>
    %cst_114 = arith.constant dense<0.000000e+00> : vector<16x32xf32>
    %292 = tpu.matmul %289, %291, %cst_114 {dimension_numbers = #tpu.dot_dimension_numbers<[1], [0], [0], [1], [0, 0, 1, 1], [], []>} : vector<16x32xbf16>, vector<32x32xbf16>, vector<16x32xf32> -> vector<16x32xf32>
    %c1_115 = arith.constant 1 : index
    %c0_116 = arith.constant 0 : index
    %c0_117 = arith.constant 0 : index
    %293 = vector.load %arg7[%c1_115, %c0_116, %c0_117] : memref<2x1x32xf32, #tpu.memory_space<vmem>>, vector<1x1x32xf32>
    %294 = vector.shape_cast %293 : vector<1x1x32xf32> to vector<1x32xf32>
    %295 = vector.broadcast %294 : vector<1x32xf32> to vector<16x32xf32>
    %296 = arith.addf %292, %295 : vector<16x32xf32>
    %297 = arith.addf %202, %296 : vector<16x32xf32>
    %c1_118 = arith.constant 1 : index
    %c0_119 = arith.constant 0 : index
    %c0_120 = arith.constant 0 : index
    %298 = vector.load %arg8[%c1_118, %c0_119, %c0_120] : memref<2x1x32xf32, #tpu.memory_space<vmem>>, vector<1x1x32xf32>
    %299 = vector.shape_cast %298 : vector<1x1x32xf32> to vector<1x32xf32>
    %c1_121 = arith.constant 1 : index
    %c0_122 = arith.constant 0 : index
    %c0_123 = arith.constant 0 : index
    %300 = vector.load %arg9[%c1_121, %c0_122, %c0_123] : memref<2x1x32xf32, #tpu.memory_space<vmem>>, vector<1x1x32xf32>
    %301 = vector.shape_cast %300 : vector<1x1x32xf32> to vector<1x32xf32>
    %cst_124 = arith.constant dense<0.000000e+00> : vector<16xf32>
    %302 = vector.multi_reduction <add>, %297, %cst_124 [1] : vector<16x32xf32> to vector<16xf32>
    %303 = vector.shape_cast %302 : vector<16xf32> to vector<16x1xf32>
    %cst_125 = arith.constant 3.200000e+01 : f32
    %304 = vector.broadcast %cst_125 : f32 to vector<16x1xf32>
    %305 = arith.divf %303, %304 : vector<16x1xf32>
    %306 = vector.broadcast %305 : vector<16x1xf32> to vector<16x32xf32>
    %307 = arith.subf %297, %306 : vector<16x32xf32>
    %308 = arith.mulf %307, %307 : vector<16x32xf32>
    %cst_126 = arith.constant dense<0.000000e+00> : vector<16xf32>
    %309 = vector.multi_reduction <add>, %308, %cst_126 [1] : vector<16x32xf32> to vector<16xf32>
    %310 = vector.shape_cast %309 : vector<16xf32> to vector<16x1xf32>
    %cst_127 = arith.constant 3.200000e+01 : f32
    %311 = vector.broadcast %cst_127 : f32 to vector<16x1xf32>
    %312 = arith.divf %310, %311 : vector<16x1xf32>
    %313 = vector.broadcast %305 : vector<16x1xf32> to vector<16x32xf32>
    %314 = arith.subf %297, %313 : vector<16x32xf32>
    %cst_128 = arith.constant 9.99999996E-13 : f32
    %315 = vector.broadcast %cst_128 : f32 to vector<16x1xf32>
    %316 = arith.addf %312, %315 : vector<16x1xf32>
    %317 = math.rsqrt %316 : vector<16x1xf32>
    %318 = vector.broadcast %317 : vector<16x1xf32> to vector<16x32xf32>
    %319 = arith.mulf %314, %318 : vector<16x32xf32>
    %320 = vector.broadcast %299 : vector<1x32xf32> to vector<16x32xf32>
    %321 = arith.mulf %319, %320 : vector<16x32xf32>
    %322 = vector.broadcast %301 : vector<1x32xf32> to vector<16x32xf32>
    %323 = arith.addf %321, %322 : vector<16x32xf32>
    %324 = arith.truncf %323 : vector<16x32xf32> to vector<16x32xbf16>
    %c1_129 = arith.constant 1 : index
    %c0_130 = arith.constant 0 : index
    %c0_131 = arith.constant 0 : index
    %325 = vector.load %arg10[%c1_129, %c0_130, %c0_131] : memref<2x32x128xbf16, #tpu.memory_space<vmem>>, vector<1x32x128xbf16>
    %326 = vector.shape_cast %325 : vector<1x32x128xbf16> to vector<32x128xbf16>
    %cst_132 = arith.constant dense<0.000000e+00> : vector<16x128xf32>
    %327 = tpu.matmul %324, %326, %cst_132 {dimension_numbers = #tpu.dot_dimension_numbers<[1], [0], [0], [1], [0, 0, 1, 1], [], []>} : vector<16x32xbf16>, vector<32x128xbf16>, vector<16x128xf32> -> vector<16x128xf32>
    %c1_133 = arith.constant 1 : index
    %c0_134 = arith.constant 0 : index
    %c0_135 = arith.constant 0 : index
    %328 = vector.load %arg11[%c1_133, %c0_134, %c0_135] : memref<2x1x128xf32, #tpu.memory_space<vmem>>, vector<1x1x128xf32>
    %329 = vector.shape_cast %328 : vector<1x1x128xf32> to vector<1x128xf32>
    %330 = vector.broadcast %329 : vector<1x128xf32> to vector<16x128xf32>
    %331 = arith.addf %327, %330 : vector<16x128xf32>
    %cst_136 = arith.constant 5.000000e-01 : f32
    %332 = vector.broadcast %cst_136 : f32 to vector<16x128xf32>
    %333 = arith.mulf %332, %331 : vector<16x128xf32>
    %cst_137 = arith.constant 4.471500e-02 : f32
    %334 = vector.broadcast %cst_137 : f32 to vector<16x128xf32>
    %335 = arith.mulf %334, %331 : vector<16x128xf32>
    %336 = arith.mulf %335, %331 : vector<16x128xf32>
    %337 = arith.mulf %336, %331 : vector<16x128xf32>
    %338 = arith.addf %331, %337 : vector<16x128xf32>
    %cst_138 = arith.constant 0.797884583 : f32
    %339 = vector.broadcast %cst_138 : f32 to vector<16x128xf32>
    %340 = arith.mulf %339, %338 : vector<16x128xf32>
    %341 = math.tanh %340 : vector<16x128xf32>
    %cst_139 = arith.constant 1.000000e+00 : f32
    %342 = vector.broadcast %cst_139 : f32 to vector<16x128xf32>
    %343 = arith.addf %342, %341 : vector<16x128xf32>
    %344 = arith.mulf %333, %343 : vector<16x128xf32>
    %345 = arith.truncf %344 : vector<16x128xf32> to vector<16x128xbf16>
    %c1_140 = arith.constant 1 : index
    %c0_141 = arith.constant 0 : index
    %c0_142 = arith.constant 0 : index
    %346 = vector.load %arg12[%c1_140, %c0_141, %c0_142] : memref<2x128x32xbf16, #tpu.memory_space<vmem>>, vector<1x128x32xbf16>
    %347 = vector.shape_cast %346 : vector<1x128x32xbf16> to vector<128x32xbf16>
    %cst_143 = arith.constant dense<0.000000e+00> : vector<16x32xf32>
    %348 = tpu.matmul %345, %347, %cst_143 {dimension_numbers = #tpu.dot_dimension_numbers<[1], [0], [0], [1], [0, 0, 1, 1], [], []>} : vector<16x128xbf16>, vector<128x32xbf16>, vector<16x32xf32> -> vector<16x32xf32>
    %c1_144 = arith.constant 1 : index
    %c0_145 = arith.constant 0 : index
    %c0_146 = arith.constant 0 : index
    %349 = vector.load %arg13[%c1_144, %c0_145, %c0_146] : memref<2x1x32xf32, #tpu.memory_space<vmem>>, vector<1x1x32xf32>
    %350 = vector.shape_cast %349 : vector<1x1x32xf32> to vector<1x32xf32>
    %351 = vector.broadcast %350 : vector<1x32xf32> to vector<16x32xf32>
    %352 = arith.addf %348, %351 : vector<16x32xf32>
    %353 = arith.addf %323, %352 : vector<16x32xf32>
    %c1_147 = arith.constant 1 : index
    %c0_148 = arith.constant 0 : index
    %c0_149 = arith.constant 0 : index
    %354 = vector.load %arg14[%c1_147, %c0_148, %c0_149] : memref<2x1x32xf32, #tpu.memory_space<vmem>>, vector<1x1x32xf32>
    %355 = vector.shape_cast %354 : vector<1x1x32xf32> to vector<1x32xf32>
    %c1_150 = arith.constant 1 : index
    %c0_151 = arith.constant 0 : index
    %c0_152 = arith.constant 0 : index
    %356 = vector.load %arg15[%c1_150, %c0_151, %c0_152] : memref<2x1x32xf32, #tpu.memory_space<vmem>>, vector<1x1x32xf32>
    %357 = vector.shape_cast %356 : vector<1x1x32xf32> to vector<1x32xf32>
    %cst_153 = arith.constant dense<0.000000e+00> : vector<16xf32>
    %358 = vector.multi_reduction <add>, %353, %cst_153 [1] : vector<16x32xf32> to vector<16xf32>
    %359 = vector.shape_cast %358 : vector<16xf32> to vector<16x1xf32>
    %cst_154 = arith.constant 3.200000e+01 : f32
    %360 = vector.broadcast %cst_154 : f32 to vector<16x1xf32>
    %361 = arith.divf %359, %360 : vector<16x1xf32>
    %362 = vector.broadcast %361 : vector<16x1xf32> to vector<16x32xf32>
    %363 = arith.subf %353, %362 : vector<16x32xf32>
    %364 = arith.mulf %363, %363 : vector<16x32xf32>
    %cst_155 = arith.constant dense<0.000000e+00> : vector<16xf32>
    %365 = vector.multi_reduction <add>, %364, %cst_155 [1] : vector<16x32xf32> to vector<16xf32>
    %366 = vector.shape_cast %365 : vector<16xf32> to vector<16x1xf32>
    %cst_156 = arith.constant 3.200000e+01 : f32
    %367 = vector.broadcast %cst_156 : f32 to vector<16x1xf32>
    %368 = arith.divf %366, %367 : vector<16x1xf32>
    %369 = vector.broadcast %361 : vector<16x1xf32> to vector<16x32xf32>
    %370 = arith.subf %353, %369 : vector<16x32xf32>
    %cst_157 = arith.constant 9.99999996E-13 : f32
    %371 = vector.broadcast %cst_157 : f32 to vector<16x1xf32>
    %372 = arith.addf %368, %371 : vector<16x1xf32>
    %373 = math.rsqrt %372 : vector<16x1xf32>
    %374 = vector.broadcast %373 : vector<16x1xf32> to vector<16x32xf32>
    %375 = arith.mulf %370, %374 : vector<16x32xf32>
    %376 = vector.broadcast %355 : vector<1x32xf32> to vector<16x32xf32>
    %377 = arith.mulf %375, %376 : vector<16x32xf32>
    %378 = vector.broadcast %357 : vector<1x32xf32> to vector<16x32xf32>
    %379 = arith.addf %377, %378 : vector<16x32xf32>
    %380 = vector.extract_strided_slice %379 {offsets = [0, 0], sizes = [1, 32], strides = [1, 1]} : vector<16x32xf32> to vector<1x32xf32>
    %381 = vector.extract_strided_slice %379 {offsets = [8, 0], sizes = [1, 32], strides = [1, 1]} : vector<16x32xf32> to vector<1x32xf32>
    %382 = tpu.concatenate %380, %381 in 0 : vector<1x32xf32>, vector<1x32xf32> -> vector<2x32xf32>
    %383 = arith.truncf %382 : vector<2x32xf32> to vector<2x32xbf16>
    %c0_158 = arith.constant 0 : index
    %c0_159 = arith.constant 0 : index
    %384 = vector.load %arg16[%c0_158, %c0_159] : memref<32x32xbf16, #tpu.memory_space<vmem>>, vector<32x32xbf16>
    %cst_160 = arith.constant dense<0.000000e+00> : vector<2x32xf32>
    %385 = tpu.matmul %383, %384, %cst_160 {dimension_numbers = #tpu.dot_dimension_numbers<[1], [0], [0], [1], [0, 0, 1, 1], [], []>} : vector<2x32xbf16>, vector<32x32xbf16>, vector<2x32xf32> -> vector<2x32xf32>
    %c0_161 = arith.constant 0 : index
    %c0_162 = arith.constant 0 : index
    %386 = vector.load %arg17[%c0_161, %c0_162] : memref<1x32xf32, #tpu.memory_space<vmem>>, vector<1x32xf32>
    %387 = vector.broadcast %386 : vector<1x32xf32> to vector<2x32xf32>
    %388 = arith.addf %385, %387 : vector<2x32xf32>
    %389 = math.tanh %388 : vector<2x32xf32>
    %390 = arith.truncf %389 : vector<2x32xf32> to vector<2x32xbf16>
    %c0_163 = arith.constant 0 : index
    %c0_164 = arith.constant 0 : index
    %391 = vector.load %arg18[%c0_163, %c0_164] : memref<32x128xbf16, #tpu.memory_space<vmem>>, vector<32x128xbf16>
    %cst_165 = arith.constant dense<0.000000e+00> : vector<2x128xf32>
    %392 = tpu.matmul %390, %391, %cst_165 {dimension_numbers = #tpu.dot_dimension_numbers<[1], [0], [0], [1], [0, 0, 1, 1], [], []>} : vector<2x32xbf16>, vector<32x128xbf16>, vector<2x128xf32> -> vector<2x128xf32>
    %c0_166 = arith.constant 0 : index
    %c0_167 = arith.constant 0 : index
    %393 = vector.load %arg19[%c0_166, %c0_167] : memref<1x128xf32, #tpu.memory_space<vmem>>, vector<1x128xf32>
    %394 = vector.broadcast %393 : vector<1x128xf32> to vector<2x128xf32>
    %395 = arith.addf %392, %394 : vector<2x128xf32>
    %c0_168 = arith.constant 0 : index
    %c0_169 = arith.constant 0 : index
    %396 = vector.load %arg20[%c0_168, %c0_169] : memref<2x128xf32, #tpu.memory_space<vmem>>, vector<2x128xf32>
    tpu.vector_store %arg20[%c0_168, %c0_169], %395 {strides = array<i32>} : memref<2x128xf32, #tpu.memory_space<vmem>>, vector<2x128xf32>,
    return
  }
}

</mosaic_0001>

<llo_original>
// kernel: sentiment_classifier_forward.1
$region0: #{sentiment_classifier_forward.1}
  #allocation0 [shape = 'u32[]', space=smem, size = 0x4, offset = 0x4, fixed_abs, tag = 'smem constant byte address 0x4 - core index']
  #allocation1 [shape = 'u32[72,128]{1,0:T(1,128)}', space=vmem, size = 0x9000, scoped, tag = 'internal scratch']
  %s0 = inlined_call_operand.vmem [shape: f32[16,32], index: 0, kind: input, shape index: {}]
  %s1 = inlined_call_operand.vmem [shape: f32[16,16], index: 1, kind: input, shape index: {}]
  %s2 = inlined_call_operand.vmem [shape: f32[1,32], index: 2, kind: input, shape index: {}]
  %s3 = inlined_call_operand.vmem [shape: f32[1,32], index: 3, kind: input, shape index: {}]
  %s4 = inlined_call_operand.vmem [shape: bf16[2,32,384], index: 4, kind: input, shape index: {}]
  %s5 = inlined_call_operand.vmem [shape: f32[2,1,384], index: 5, kind: input, shape index: {}]
  %s6 = inlined_call_operand.vmem [shape: bf16[2,32,32], index: 6, kind: input, shape index: {}]
  %s7 = inlined_call_operand.vmem [shape: f32[2,1,32], index: 7, kind: input, shape index: {}]
  %s8 = inlined_call_operand.vmem [shape: f32[2,1,32], index: 8, kind: input, shape index: {}]
  %s9 = inlined_call_operand.vmem [shape: f32[2,1,32], index: 9, kind: input, shape index: {}]
  %s10 = inlined_call_operand.vmem [shape: bf16[2,32,128], index: 10, kind: input, shape index: {}]
  %s11 = inlined_call_operand.vmem [shape: f32[2,1,128], index: 11, kind: input, shape index: {}]
  %s12 = inlined_call_operand.vmem [shape: bf16[2,128,32], index: 12, kind: input, shape index: {}]
  %s13 = inlined_call_operand.vmem [shape: f32[2,1,32], index: 13, kind: input, shape index: {}]
  %s14 = inlined_call_operand.vmem [shape: f32[2,1,32], index: 14, kind: input, shape index: {}]
  %s15 = inlined_call_operand.vmem [shape: f32[2,1,32], index: 15, kind: input, shape index: {}]
  %s16 = inlined_call_operand.vmem [shape: bf16[32,32], index: 16, kind: input, shape index: {}]
  %s17 = inlined_call_operand.vmem [shape: f32[1,32], index: 17, kind: input, shape index: {}]
  %s18 = inlined_call_operand.vmem [shape: bf16[32,128], index: 18, kind: input, shape index: {}]
  %s19 = inlined_call_operand.vmem [shape: f32[1,128], index: 19, kind: input, shape index: {}]
  %s20 = inlined_call_operand.hbm [shape: f32[2,128], index: 20, kind: output, shape index: {}]
  %s21 = sld [smem:[#allocation0]]
  $region90: #{sentiment_classifier_forward.1} parent=0
    _
  %s23 = ssub.s32 1, %s21
  %s24 = scalar_select 0, %s23, %s21
  $region1: #{sentiment_classifier_forward.1} parent=0
    #allocation2 [shape = 'u8[1024]{0}', space=vmem, size = 0x400, scoped, tag = 'output window, operand 0, single buffered']
    #allocation3 [shape = 's32[1]{0}', space=sflag, size = 0x4, scoped, tag = 'scoped memory for sentiment_classifier_forward.1']
    %25 = vsyncpa [#allocation3], 0
    // Predicated region
    $region2: #{sentiment_classifier_forward.1} parent=1 // pred_check
      _
    $region3: #{sentiment_classifier_forward.1} parent=1 // pred_check_branch
      %27 = sbr.rel (0) target = $region5
    $region4: #{sentiment_classifier_forward.1} parent=1 // pred_region
      _
    $region5: #{sentiment_classifier_forward.1} parent=1 // pred_fallthru
      _
    // Predicated region
    $region6: #{sentiment_classifier_forward.1} parent=1 // pred_check
      _
    $region7: #{sentiment_classifier_forward.1} parent=1 // pred_check_branch
      %29 = sbr.rel (0) target = $region9
    $region8: #{sentiment_classifier_forward.1} parent=1 // pred_region
      _
    $region9: #{sentiment_classifier_forward.1} parent=1 // pred_fallthru
      _
    // Predicated region
    $region10: #{sentiment_classifier_forward.1} parent=1 // pred_check
      _
    $region11: #{sentiment_classifier_forward.1} parent=1 // pred_check_branch
      %31 = sbr.rel (0) target = $region13
    $region12: #{sentiment_classifier_forward.1} parent=1 // pred_region
      _
    $region13: #{sentiment_classifier_forward.1} parent=1 // pred_fallthru
      _
    // Predicated region
    $region14: #{sentiment_classifier_forward.1} parent=1 // pred_check
      _
    $region15: #{sentiment_classifier_forward.1} parent=1 // pred_check_branch
      %33 = sbr.rel (0) target = $region17
    $region16: #{sentiment_classifier_forward.1} parent=1 // pred_region
      _
    $region17: #{sentiment_classifier_forward.1} parent=1 // pred_fallthru
      _
    // Predicated region
    $region18: #{sentiment_classifier_forward.1} parent=1 // pred_check
      _
    $region19: #{sentiment_classifier_forward.1} parent=1 // pred_check_branch
      %35 = sbr.rel (0) target = $region21
    $region20: #{sentiment_classifier_forward.1} parent=1 // pred_region
      _
    $region21: #{sentiment_classifier_forward.1} parent=1 // pred_fallthru
      _
    // Predicated region
    $region22: #{sentiment_classifier_forward.1} parent=1 // pred_check
      _
    $region23: #{sentiment_classifier_forward.1} parent=1 // pred_check_branch
      %37 = sbr.rel (0) target = $region25
    $region24: #{sentiment_classifier_forward.1} parent=1 // pred_region
      _
    $region25: #{sentiment_classifier_forward.1} parent=1 // pred_fallthru
      _
    // Predicated region
    $region26: #{sentiment_classifier_forward.1} parent=1 // pred_check
      _
    $region27: #{sentiment_classifier_forward.1} parent=1 // pred_check_branch
      %39 = sbr.rel (0) target = $region29
    $region28: #{sentiment_classifier_forward.1} parent=1 // pred_region
      _
    $region29: #{sentiment_classifier_forward.1} parent=1 // pred_fallthru
      _
    // Predicated region
    $region30: #{sentiment_classifier_forward.1} parent=1 // pred_check
      _
    $region31: #{sentiment_classifier_forward.1} parent=1 // pred_check_branch
      %41 = sbr.rel (0) target = $region33
    $region32: #{sentiment_classifier_forward.1} parent=1 // pred_region
      _
    $region33: #{sentiment_classifier_forward.1} parent=1 // pred_fallthru
      _
    // Predicated region
    $region34: #{sentiment_classifier_forward.1} parent=1 // pred_check
      _
    $region35: #{sentiment_classifier_forward.1} parent=1 // pred_check_branch
      %43 = sbr.rel (0) target = $region37
    $region36: #{sentiment_classifier_forward.1} parent=1 // pred_region
      _
    $region37: #{sentiment_classifier_forward.1} parent=1 // pred_fallthru
      _
    // Predicated region
    $region38: #{sentiment_classifier_forward.1} parent=1 // pred_check
      _
    $region39: #{sentiment_classifier_forward.1} parent=1 // pred_check_branch
      %45 = sbr.rel (0) target = $region41
    $region40: #{sentiment_classifier_forward.1} parent=1 // pred_region
      _
    $region41: #{sentiment_classifier_forward.1} parent=1 // pred_fallthru
      _
    // Predicated region
    $region42: #{sentiment_classifier_forward.1} parent=1 // pred_check
      _
    $region43: #{sentiment_classifier_forward.1} parent=1 // pred_check_branch
      %47 = sbr.rel (0) target = $region45
    $region44: #{sentiment_classifier_forward.1} parent=1 // pred_region
      _
    $region45: #{sentiment_classifier_forward.1} parent=1 // pred_fallthru
      _
    // Predicated region
    $region46: #{sentiment_classifier_forward.1} parent=1 // pred_check
      _
    $region47: #{sentiment_classifier_forward.1} parent=1 // pred_check_branch
      %49 = sbr.rel (0) target = $region49
    $region48: #{sentiment_classifier_forward.1} parent=1 // pred_region
      _
    $region49: #{sentiment_classifier_forward.1} parent=1 // pred_fallthru
      _
    // Predicated region
    $region50: #{sentiment_classifier_forward.1} parent=1 // pred_check
      _
    $region51: #{sentiment_classifier_forward.1} parent=1 // pred_check_branch
      %51 = sbr.rel (0) target = $region53
    $region52: #{sentiment_classifier_forward.1} parent=1 // pred_region
      _
    $region53: #{sentiment_classifier_forward.1} parent=1 // pred_fallthru
      _
    // Predicated region
    $region54: #{sentiment_classifier_forward.1} parent=1 // pred_check
      _
    $region55: #{sentiment_classifier_forward.1} parent=1 // pred_check_branch
      %53 = sbr.rel (0) target = $region57
    $region56: #{sentiment_classifier_forward.1} parent=1 // pred_region
      _
    $region57: #{sentiment_classifier_forward.1} parent=1 // pred_fallthru
      _
    // Predicated region
    $region58: #{sentiment_classifier_forward.1} parent=1 // pred_check
      _
    $region59: #{sentiment_classifier_forward.1} parent=1 // pred_check_branch
      %55 = sbr.rel (0) target = $region61
    $region60: #{sentiment_classifier_forward.1} parent=1 // pred_region
      _
    $region61: #{sentiment_classifier_forward.1} parent=1 // pred_fallthru
      _
    // Predicated region
    $region62: #{sentiment_classifier_forward.1} parent=1 // pred_check
      _
    $region63: #{sentiment_classifier_forward.1} parent=1 // pred_check_branch
      %57 = sbr.rel (0) target = $region65
    $region64: #{sentiment_classifier_forward.1} parent=1 // pred_region
      _
    $region65: #{sentiment_classifier_forward.1} parent=1 // pred_fallthru
      _
    // Predicated region
    $region66: #{sentiment_classifier_forward.1} parent=1 // pred_check
      _
    $region67: #{sentiment_classifier_forward.1} parent=1 // pred_check_branch
      %59 = sbr.rel (0) target = $region69
    $region68: #{sentiment_classifier_forward.1} parent=1 // pred_region
      _
    $region69: #{sentiment_classifier_forward.1} parent=1 // pred_fallthru
      _
    // Predicated region
    $region70: #{sentiment_classifier_forward.1} parent=1 // pred_check
      _
    $region71: #{sentiment_classifier_forward.1} parent=1 // pred_check_branch
      %61 = sbr.rel (0) target = $region73
    $region72: #{sentiment_classifier_forward.1} parent=1 // pred_region
      _
    $region73: #{sentiment_classifier_forward.1} parent=1 // pred_fallthru
      _
    // Predicated region
    $region74: #{sentiment_classifier_forward.1} parent=1 // pred_check
      _
    $region75: #{sentiment_classifier_forward.1} parent=1 // pred_check_branch
      %63 = sbr.rel (0) target = $region77
    $region76: #{sentiment_classifier_forward.1} parent=1 // pred_region
      _
    $region77: #{sentiment_classifier_forward.1} parent=1 // pred_fallthru
      _
    // Predicated region
    $region78: #{sentiment_classifier_forward.1} parent=1 // pred_check
      _
    $region79: #{sentiment_classifier_forward.1} parent=1 // pred_check_branch
      %65 = sbr.rel (0) target = $region81
    $region80: #{sentiment_classifier_forward.1} parent=1 // pred_region
      _
    $region81: #{sentiment_classifier_forward.1} parent=1 // pred_fallthru
      _
    %v67 = vld [vmem:[%s1] sm:$0xff]
    %v68 = vld [vmem:[%s1 + $0x8] sm:$0xff]
    %v69 = vld [vmem:[%s0] sm:$0xff]
    %v70 = vld [vmem:[%s0 + $0x8] sm:$0xff]
    %v71 = vld [vmem:[%s2] sm:$0x1]
    %v72 = vld [vmem:[%s3] sm:$0x1]
    %vm73 = vcmask 261120
    %v74 = vsel %vm73, %v69, 0.0
    %75 = vadd.xlane.f32.xlu0 %v74
    %v76 = vpop.xlane.xlu0 %75
    %v77 = vsel %vm73, %v70, 0.0
    %78 = vadd.xlane.f32.xlu0 %v77
    %v79 = vpop.xlane.xlu0 %78
    %v80 = vrcp.pop 32.0
    %v81 = vmul.f32 32.0, %v80
    %v82 = vsub.f32 1.0, %v81
    %v83 = vmul.f32 %v80, %v82
    %v84 = vadd.f32 %v80, %v83
    %vm85 = vweird.f32 %v80
    %v86 = vsel %vm85, %v80, %v84
    %v87 = vmul.f32 %v76, %v86
    %v88 = vmul.f32 %v79, %v86
    %v89 = vsub.f32 %v69, %v87
    %v90 = vsub.f32 %v70, %v88
    %v91 = vmul.f32 %v89, %v89
    %v92 = vmul.f32 %v90, %v90
    %v93 = vsel %vm73, %v91, 0.0
    %94 = vadd.xlane.f32.xlu0 %v93
    %v95 = vpop.xlane.xlu0 %94
    %v96 = vsel %vm73, %v92, 0.0
    %97 = vadd.xlane.f32.xlu0 %v96
    %v98 = vpop.xlane.xlu0 %97
    %v99 = vmul.f32 %v95, %v86
    %v100 = vmul.f32 %v98, %v86
    %v101 = vadd.f32 %v99, 1e-12
    %v102 = vadd.f32 %v100, 1e-12
    %v103 = vrsqrt.pop %v101
    %v104 = vmul.f32 %v103, %v101
    %v105 = vmul.f32 %v104, %v103
    %v106 = vmul.f32 0.5, %v105
    %v107 = vsub.f32 1.5, %v106
    %v108 = vmul.f32 %v103, %v107
    %vm109 = vweird.f32 %v101
    %vm110 = vweird.f32 %v103
    %vm111 = vmor %vm109, %vm110
    %v112 = vsel %vm111, %v103, %v108
    %v113 = vrsqrt.pop %v102
    %v114 = vmul.f32 %v113, %v102
    %v115 = vmul.f32 %v114, %v113
    %v116 = vmul.f32 0.5, %v115
    %v117 = vsub.f32 1.5, %v116
    %v118 = vmul.f32 %v113, %v117
    %vm119 = vweird.f32 %v102
    %vm120 = vweird.f32 %v113
    %vm121 = vmor %vm119, %vm120
    %v122 = vsel %vm121, %v113, %v118
    %v123 = vmul.f32 %v89, %v112
    %v124 = vmul.f32 %v90, %v122
    %v126 = vperm.slane %v71, 0
    %v128 = vmul.f32 %v123, %v126
    %v129 = vmul.f32 %v124, %v126
    %v131 = vperm.slane %v72, 0
    %v133 = vadd.f32 %v128, %v131
    %v134 = vadd.f32 %v129, %v131
    %v135 = vpack.c.bf16 %v134, %v133
    %v136 = vld [vmem:[%s4] sm:$0xff]
    %v137 = vld [vmem:[%s4 + $0x8] sm:$0xf]
    %v138 = vld [vmem:[%s4 + $0xc] sm:$0xff]
    %v139 = vld [vmem:[%s4 + $0x14] sm:$0xf]
    %v140 = vld [vmem:[%s4 + $0x18] sm:$0xff]
    %v141 = vld [vmem:[%s4 + $0x20] sm:$0xf]
    %v142 = vld [vmem:[%s4 + $0x24] sm:$0xff]
    %v143 = vld [vmem:[%s4 + $0x2c] sm:$0xf]
    %v144 = vld [vmem:[%s5] sm:$0x7]
    %v146 = vperm.slane %v144, 0
    %v147 = vperm.slane %v144, 1
    %v148 = vperm.slane %v144, 2
    %v160 = vunpack.c.l.b16 %v136
    %v161 = vunpack.c.h.b16 %v136
    %v162 = vunpack.c.l.b16 %v137
    %v163 = vunpack.c.l.b16 %v138
    %v164 = vunpack.c.h.b16 %v138
    %v165 = vunpack.c.l.b16 %v139
    %v166 = vunpack.c.l.b16 %v140
    %v167 = vunpack.c.h.b16 %v140
    %v168 = vunpack.c.l.b16 %v141
    %v169 = vunpack.c.l.b16 %v142
    %v170 = vunpack.c.h.b16 %v142
    %v171 = vunpack.c.l.b16 %v143
    %v172 = vpack.c.b16 %v163, %v160
    %v173 = vpack.c.b16 %v164, %v161
    %v174 = vpack.c.b16 %v165, %v162
    %v175 = vpack.c.b16 %v169, %v166
    %v176 = vpack.c.b16 %v170, %v167
    %v177 = vpack.c.b16 %v171, %v168
    %v185 = vsel %vm73, %v135, 0
    %187 = vmatpush.bf16.msra.mxu0 0
    %188 = vmatpush.bf16.msra.mxu0 0
    %189 = vmatpush.bf16.msra.mxu0 0
    %190 = vmatpush.bf16.msra.mxu0 0
    %191 = vmatpush.bf16.msra.mxu0 0
    %192 = vmatpush.bf16.msra.mxu0 0
    %193 = vmatpush.bf16.msra.mxu0 %v175
    %194 = vmatpush.bf16.msra.mxu0 %v172
    %195 = vmatmul.bf16.gmra.mxu0 %v185
    %v196 = vpop.f32.mrf.mxu0
    %v197 = vadd.f32 %v146, %v196
    %v198 = vpop.f32.mrf.mxu0
    %v199 = vadd.f32 %v146, %v198
    %200 = vdwg.mxu0
    %201 = vmatpush.bf16.msra.mxu0 0
    %202 = vmatpush.bf16.msra.mxu0 0
    %203 = vmatpush.bf16.msra.mxu0 0
    %204 = vmatpush.bf16.msra.mxu0 0
    %205 = vmatpush.bf16.msra.mxu0 0
    %206 = vmatpush.bf16.msra.mxu0 0
    %207 = vmatpush.bf16.msra.mxu0 %v176
    %208 = vmatpush.bf16.msra.mxu0 %v173
    %209 = vmatmul.bf16.gmra.mxu0 %v185
    %v210 = vpop.f32.mrf.mxu0
    %v211 = vadd.f32 %v147, %v210
    %v212 = vpop.f32.mrf.mxu0
    %v213 = vadd.f32 %v147, %v212
    %214 = vdwg.mxu0
    %215 = vmatpush.bf16.msra.mxu0 0
    %216 = vmatpush.bf16.msra.mxu0 0
    %217 = vmatpush.bf16.msra.mxu0 0
    %218 = vmatpush.bf16.msra.mxu0 0
    %219 = vmatpush.bf16.msra.mxu0 0
    %220 = vmatpush.bf16.msra.mxu0 0
    %221 = vmatpush.bf16.msra.mxu0 %v177
    %222 = vmatpush.bf16.msra.mxu0 %v174
    %223 = vmatmul.bf16.gmra.mxu0 %v185
    %v224 = vpop.f32.mrf.mxu0
    %v225 = vadd.f32 %v148, %v224
    %v226 = vpop.f32.mrf.mxu0
    %v227 = vadd.f32 %v148, %v226
    %228 = vdwg.mxu0
    %v229 = vpack.c.bf16 %v211, %v197
    %v230 = vpack.c.bf16 %v225, %v225
    %v231 = vpack.c.bf16 %v213, %v199
    %v232 = vpack.c.bf16 %v227, %v227
    %v235 = vunpack.c.l.b16 %v229
    %v236 = vunpack.c.l.b16 %v231
    %v237 = vpack.c.b16 %v236, %v235
    %v238 = vunpack.c.h.b16 %v229
    %v239 = vunpack.c.h.b16 %v231
    %v240 = vpack.c.b16 %v239, %v238
    %vm241 = vcmask 64512
    %v243 = vsel %vm241, %v237, 0
    %v246 = vsel %vm241, %v240, 0
    %248 = vmatpush.bf16.xpose.msra.mxu0 0
    %249 = vmatpush.bf16.xpose.msra.mxu0 0
    %250 = vmatpush.bf16.xpose.msra.mxu0 0
    %251 = vmatpush.bf16.xpose.msra.mxu0 0
    %252 = vmatpush.bf16.xpose.msra.mxu0 0
    %253 = vmatpush.bf16.xpose.msra.mxu0 0
    %254 = vmatpush.bf16.xpose.msra.mxu0 0
    %255 = vmatpush.bf16.xpose.msra.mxu0 %v246
    %256 = vmatmul.bf16.gmra.mxu0 %v243
    %v257 = vpop.f32.mrf.mxu0
    %v258 = vadd.f32 0.0, %v257
    %v259 = vpop.f32.mrf.mxu0
    %v260 = vadd.f32 0.0, %v259
    %261 = vdwg.mxu0
    %v262 = vmul.f32 %v258, 0.35355338
    %v263 = vmul.f32 %v260, 0.35355338
    %v264 = vadd.f32 %v262, %v67
    %v265 = vadd.f32 %v263, %v68
    %vm266 = vcmask 130048
    %v267 = vsel %vm266, %v264, -inf
    %268 = vmax.xlane.f32.xlu0 %v267
    %v269 = vpop.xlane.xlu0 %268
    %v270 = vsel %vm266, %v265, -inf
    %271 = vmax.xlane.f32.xlu0 %v270
    %v272 = vpop.xlane.xlu0 %271
    %v273 = vsub.f32 %v264, %v269
    %v274 = vsub.f32 %v265, %v272
    %v275 = vmul.f32 %v273, 1.442695
    %v276 = vpow.pop %v275
    %v277 = vmul.f32 %v274, 1.442695
    %v278 = vpow.pop %v277
    %v279 = vsel %vm266, %v276, 0.0
    %280 = vadd.xlane.f32.xlu0 %v279
    %v281 = vpop.xlane.xlu0 %280
    %v282 = vsel %vm266, %v278, 0.0
    %283 = vadd.xlane.f32.xlu0 %v282
    %v284 = vpop.xlane.xlu0 %283
    %v285 = vrcp.pop %v281
    %v286 = vrcp.pop %v284
    %v287 = vmul.f32 %v276, %v285
    %v288 = vmul.f32 %v278, %v286
    %v289 = vpack.c.bf16 %v288, %v287
    %v292 = vunpack.c.l.b16 %v230
    %v293 = vunpack.c.l.b16 %v232
    %v294 = vpack.c.b16 %v293, %v292
    %v297 = vsel %vm266, %v289, 0
    %299 = vmatpush.bf16.msra.mxu0 0
    %300 = vmatpush.bf16.msra.mxu0 0
    %301 = vmatpush.bf16.msra.mxu0 0
    %302 = vmatpush.bf16.msra.mxu0 0
    %303 = vmatpush.bf16.msra.mxu0 0
    %304 = vmatpush.bf16.msra.mxu0 0
    %305 = vmatpush.bf16.msra.mxu0 0
    %306 = vmatpush.bf16.msra.mxu0 %v294
    %307 = vmatmul.bf16.gmra.mxu0 %v297
    %v308 = vpop.f32.mrf.mxu0
    %v309 = vadd.f32 0.0, %v308
    %v310 = vpop.f32.mrf.mxu0
    %v311 = vadd.f32 0.0, %v310
    %312 = vdwg.mxu0
    %313 = vrot.lane.b32.xlu0 %v237, 120
    %v314 = vpop.permute.xlu0 %313
    %315 = vrot.lane.b32.xlu0 %v240, 120
    %v316 = vpop.permute.xlu0 %315
    %v318 = vsel %vm241, %v314, 0
    %v321 = vsel %vm241, %v316, 0
    %323 = vmatpush.bf16.xpose.msra.mxu0 0
    %324 = vmatpush.bf16.xpose.msra.mxu0 0
    %325 = vmatpush.bf16.xpose.msra.mxu0 0
    %326 = vmatpush.bf16.xpose.msra.mxu0 0
    %327 = vmatpush.bf16.xpose.msra.mxu0 0
    %328 = vmatpush.bf16.xpose.msra.mxu0 0
    %329 = vmatpush.bf16.xpose.msra.mxu0 0
    %330 = vmatpush.bf16.xpose.msra.mxu0 %v321
    %331 = vmatmul.bf16.gmra.mxu0 %v318
    %v332 = vpop.f32.mrf.mxu0
    %v333 = vadd.f32 0.0, %v332
    %v334 = vpop.f32.mrf.mxu0
    %v335 = vadd.f32 0.0, %v334
    %336 = vdwg.mxu0
    %v337 = vmul.f32 %v333, 0.35355338
    %v338 = vmul.f32 %v335, 0.35355338
    %v339 = vadd.f32 %v337, %v67
    %v340 = vadd.f32 %v338, %v68
    %v341 = vsel %vm266, %v339, -inf
    %342 = vmax.xlane.f32.xlu0 %v341
    %v343 = vpop.xlane.xlu0 %342
    %v344 = vsel %vm266, %v340, -inf
    %345 = vmax.xlane.f32.xlu0 %v344
    %v346 = vpop.xlane.xlu0 %345
    %v347 = vsub.f32 %v339, %v343
    %v348 = vsub.f32 %v340, %v346
    %v349 = vmul.f32 %v347, 1.442695
    %v350 = vpow.pop %v349
    %v351 = vmul.f32 %v348, 1.442695
    %v352 = vpow.pop %v351
    %v353 = vsel %vm266, %v350, 0.0
    %354 = vadd.xlane.f32.xlu0 %v353
    %v355 = vpop.xlane.xlu0 %354
    %v356 = vsel %vm266, %v352, 0.0
    %357 = vadd.xlane.f32.xlu0 %v356
    %v358 = vpop.xlane.xlu0 %357
    %v359 = vrcp.pop %v355
    %v360 = vrcp.pop %v358
    %v361 = vmul.f32 %v350, %v359
    %v362 = vmul.f32 %v352, %v360
    %v363 = vpack.c.bf16 %v362, %v361
    %364 = vrot.lane.b32.xlu0 %v294, 120
    %v365 = vpop.permute.xlu0 %364
    %v368 = vsel %vm266, %v363, 0
    %370 = vmatpush.bf16.msra.mxu0 0
    %371 = vmatpush.bf16.msra.mxu0 0
    %372 = vmatpush.bf16.msra.mxu0 0
    %373 = vmatpush.bf16.msra.mxu0 0
    %374 = vmatpush.bf16.msra.mxu0 0
    %375 = vmatpush.bf16.msra.mxu0 0
    %376 = vmatpush.bf16.msra.mxu0 0
    %377 = vmatpush.bf16.msra.mxu0 %v365
    %378 = vmatmul.bf16.gmra.mxu0 %v368
    %v379 = vpop.f32.mrf.mxu0
    %v380 = vadd.f32 0.0, %v379
    %v381 = vpop.f32.mrf.mxu0
    %v382 = vadd.f32 0.0, %v381
    %383 = vdwg.mxu0
    %384 = vrot.lane.b32.xlu0 %v237, 112
    %v385 = vpop.permute.xlu0 %384
    %386 = vrot.lane.b32.xlu0 %v240, 112
    %v387 = vpop.permute.xlu0 %386
    %v389 = vsel %vm241, %v385, 0
    %v392 = vsel %vm241, %v387, 0
    %394 = vmatpush.bf16.xpose.msra.mxu0 0
    %395 = vmatpush.bf16.xpose.msra.mxu0 0
    %396 = vmatpush.bf16.xpose.msra.mxu0 0
    %397 = vmatpush.bf16.xpose.msra.mxu0 0
    %398 = vmatpush.bf16.xpose.msra.mxu0 0
    %399 = vmatpush.bf16.xpose.msra.mxu0 0
    %400 = vmatpush.bf16.xpose.msra.mxu0 0
    %401 = vmatpush.bf16.xpose.msra.mxu0 %v392
    %402 = vmatmul.bf16.gmra.mxu0 %v389
    %v403 = vpop.f32.mrf.mxu0
    %v404 = vadd.f32 0.0, %v403
    %v405 = vpop.f32.mrf.mxu0
    %v406 = vadd.f32 0.0, %v405
    %407 = vdwg.mxu0
    %v408 = vmul.f32 %v404, 0.35355338
    %v409 = vmul.f32 %v406, 0.35355338
    %v410 = vadd.f32 %v408, %v67
    %v411 = vadd.f32 %v409, %v68
    %v412 = vsel %vm266, %v410, -inf
    %413 = vmax.xlane.f32.xlu0 %v412
    %v414 = vpop.xlane.xlu0 %413
    %v415 = vsel %vm266, %v411, -inf
    %416 = vmax.xlane.f32.xlu0 %v415
    %v417 = vpop.xlane.xlu0 %416
    %v418 = vsub.f32 %v410, %v414
    %v419 = vsub.f32 %v411, %v417
    %v420 = vmul.f32 %v418, 1.442695
    %v421 = vpow.pop %v420
    %v422 = vmul.f32 %v419, 1.442695
    %v423 = vpow.pop %v422
    %v424 = vsel %vm266, %v421, 0.0
    %425 = vadd.xlane.f32.xlu0 %v424
    %v426 = vpop.xlane.xlu0 %425
    %v427 = vsel %vm266, %v423, 0.0
    %428 = vadd.xlane.f32.xlu0 %v427
    %v429 = vpop.xlane.xlu0 %428
    %v430 = vrcp.pop %v426
    %v431 = vrcp.pop %v429
    %v432 = vmul.f32 %v421, %v430
    %v433 = vmul.f32 %v423, %v431
    %v434 = vpack.c.bf16 %v433, %v432
    %435 = vrot.lane.b32.xlu0 %v294, 112
    %v436 = vpop.permute.xlu0 %435
    %v439 = vsel %vm266, %v434, 0
    %441 = vmatpush.bf16.msra.mxu0 0
    %442 = vmatpush.bf16.msra.mxu0 0
    %443 = vmatpush.bf16.msra.mxu0 0
    %444 = vmatpush.bf16.msra.mxu0 0
    %445 = vmatpush.bf16.msra.mxu0 0
    %446 = vmatpush.bf16.msra.mxu0 0
    %447 = vmatpush.bf16.msra.mxu0 0
    %448 = vmatpush.bf16.msra.mxu0 %v436
    %449 = vmatmul.bf16.gmra.mxu0 %v439
    %v450 = vpop.f32.mrf.mxu0
    %v451 = vadd.f32 0.0, %v450
    %v452 = vpop.f32.mrf.mxu0
    %v453 = vadd.f32 0.0, %v452
    %454 = vdwg.mxu0
    %455 = vrot.lane.b32.xlu0 %v237, 104
    %v456 = vpop.permute.xlu0 %455
    %457 = vrot.lane.b32.xlu0 %v240, 104
    %v458 = vpop.permute.xlu0 %457
    %v460 = vsel %vm241, %v456, 0
    %v463 = vsel %vm241, %v458, 0
    %465 = vmatpush.bf16.xpose.msra.mxu0 0
    %466 = vmatpush.bf16.xpose.msra.mxu0 0
    %467 = vmatpush.bf16.xpose.msra.mxu0 0
    %468 = vmatpush.bf16.xpose.msra.mxu0 0
    %469 = vmatpush.bf16.xpose.msra.mxu0 0
    %470 = vmatpush.bf16.xpose.msra.mxu0 0
    %471 = vmatpush.bf16.xpose.msra.mxu0 0
    %472 = vmatpush.bf16.xpose.msra.mxu0 %v463
    %473 = vmatmul.bf16.gmra.mxu0 %v460
    %v474 = vpop.f32.mrf.mxu0
    %v475 = vadd.f32 0.0, %v474
    %v476 = vpop.f32.mrf.mxu0
    %v477 = vadd.f32 0.0, %v476
    %478 = vdwg.mxu0
    %v479 = vmul.f32 %v475, 0.35355338
    %v480 = vmul.f32 %v477, 0.35355338
    %v481 = vadd.f32 %v479, %v67
    %v482 = vadd.f32 %v480, %v68
    %v483 = vsel %vm266, %v481, -inf
    %484 = vmax.xlane.f32.xlu0 %v483
    %v485 = vpop.xlane.xlu0 %484
    %v486 = vsel %vm266, %v482, -inf
    %487 = vmax.xlane.f32.xlu0 %v486
    %v488 = vpop.xlane.xlu0 %487
    %v489 = vsub.f32 %v481, %v485
    %v490 = vsub.f32 %v482, %v488
    %v491 = vmul.f32 %v489, 1.442695
    %v492 = vpow.pop %v491
    %v493 = vmul.f32 %v490, 1.442695
    %v494 = vpow.pop %v493
    %v495 = vsel %vm266, %v492, 0.0
    %496 = vadd.xlane.f32.xlu0 %v495
    %v497 = vpop.xlane.xlu0 %496
    %v498 = vsel %vm266, %v494, 0.0
    %499 = vadd.xlane.f32.xlu0 %v498
    %v500 = vpop.xlane.xlu0 %499
    %v501 = vrcp.pop %v497
    %v502 = vrcp.pop %v500
    %v503 = vmul.f32 %v492, %v501
    %v504 = vmul.f32 %v494, %v502
    %v505 = vpack.c.bf16 %v504, %v503
    %506 = vrot.lane.b32.xlu0 %v294, 104
    %v507 = vpop.permute.xlu0 %506
    %v510 = vsel %vm266, %v505, 0
    %512 = vmatpush.bf16.msra.mxu0 0
    %513 = vmatpush.bf16.msra.mxu0 0
    %514 = vmatpush.bf16.msra.mxu0 0
    %515 = vmatpush.bf16.msra.mxu0 0
    %516 = vmatpush.bf16.msra.mxu0 0
    %517 = vmatpush.bf16.msra.mxu0 0
    %518 = vmatpush.bf16.msra.mxu0 0
    %519 = vmatpush.bf16.msra.mxu0 %v507
    %520 = vmatmul.bf16.gmra.mxu0 %v510
    %v521 = vpop.f32.mrf.mxu0
    %v522 = vadd.f32 0.0, %v521
    %v523 = vpop.f32.mrf.mxu0
    %v524 = vadd.f32 0.0, %v523
    %525 = vdwg.mxu0
    %528 = vrot.lane.b32.xlu0 %v380, 8
    %v529 = vpop.permute.xlu0 %528
    %530 = vrot.lane.b32.xlu0 %v382, 8
    %v531 = vpop.permute.xlu0 %530
    %536 = vrot.lane.b32.xlu0 %v451, 16
    %v537 = vpop.permute.xlu0 %536
    %538 = vrot.lane.b32.xlu0 %v453, 16
    %v539 = vpop.permute.xlu0 %538
    %544 = vrot.lane.b32.xlu0 %v522, 24
    %v545 = vpop.permute.xlu0 %544
    %546 = vrot.lane.b32.xlu0 %v524, 24
    %v547 = vpop.permute.xlu0 %546
    %v550 = vsel %vm241, %v309, %v529
    %v551 = vsel %vm241, %v311, %v531
    %v552 = vsel %vm266, %v550, %v537
    %v553 = vsel %vm266, %v551, %v539
    %vm554 = vcmask 195584
    %v555 = vsel %vm554, %v552, %v545
    %v556 = vsel %vm554, %v553, %v547
    %v557 = vpack.c.bf16 %v556, %v555
    %v558 = vld [vmem:[%s6] sm:$0xf]
    %v559 = vld [vmem:[%s6 + $0x4] sm:$0xf]
    %v560 = vld [vmem:[%s6 + $0x8] sm:$0xf]
    %v561 = vld [vmem:[%s6 + $0xc] sm:$0xf]
    %v562 = vld [vmem:[%s7] sm:$0x1]
    %v564 = vperm.slane %v562, 0
    %v570 = vunpack.c.l.b16 %v558
    %v571 = vunpack.c.l.b16 %v559
    %v572 = vunpack.c.l.b16 %v560
    %v573 = vunpack.c.l.b16 %v561
    %v574 = vpack.c.b16 %v571, %v570
    %v575 = vpack.c.b16 %v573, %v572
    %v579 = vsel %vm73, %v557, 0
    %581 = vmatpush.bf16.msra.mxu0 0
    %582 = vmatpush.bf16.msra.mxu0 0
    %583 = vmatpush.bf16.msra.mxu0 0
    %584 = vmatpush.bf16.msra.mxu0 0
    %585 = vmatpush.bf16.msra.mxu0 0
    %586 = vmatpush.bf16.msra.mxu0 0
    %587 = vmatpush.bf16.msra.mxu0 %v575
    %588 = vmatpush.bf16.msra.mxu0 %v574
    %589 = vmatmul.bf16.gmra.mxu0 %v579
    %v590 = vpop.f32.mrf.mxu0
    %v591 = vadd.f32 %v564, %v590
    %v592 = vpop.f32.mrf.mxu0
    %v593 = vadd.f32 %v564, %v592
    %594 = vdwg.mxu0
    %v595 = vadd.f32 %v133, %v591
    %v596 = vadd.f32 %v134, %v593
    %v597 = vld [vmem:[%s8] sm:$0x1]
    %v598 = vld [vmem:[%s9] sm:$0x1]
    %v599 = vsel %vm73, %v595, 0.0
    %600 = vadd.xlane.f32.xlu0 %v599
    %v601 = vpop.xlane.xlu0 %600
    %v602 = vsel %vm73, %v596, 0.0
    %603 = vadd.xlane.f32.xlu0 %v602
    %v604 = vpop.xlane.xlu0 %603
    %v605 = vmul.f32 %v601, %v86
    %v606 = vmul.f32 %v604, %v86
    %v607 = vsub.f32 %v595, %v605
    %v608 = vsub.f32 %v596, %v606
    %v609 = vmul.f32 %v607, %v607
    %v610 = vmul.f32 %v608, %v608
    %v611 = vsel %vm73, %v609, 0.0
    %612 = vadd.xlane.f32.xlu0 %v611
    %v613 = vpop.xlane.xlu0 %612
    %v614 = vsel %vm73, %v610, 0.0
    %615 = vadd.xlane.f32.xlu0 %v614
    %v616 = vpop.xlane.xlu0 %615
    %v617 = vmul.f32 %v613, %v86
    %v618 = vmul.f32 %v616, %v86
    %v619 = vadd.f32 %v617, 1e-12
    %v620 = vadd.f32 %v618, 1e-12
    %v621 = vrsqrt.pop %v619
    %v622 = vmul.f32 %v621, %v619
    %v623 = vmul.f32 %v622, %v621
    %v624 = vmul.f32 0.5, %v623
    %v625 = vsub.f32 1.5, %v624
    %v626 = vmul.f32 %v621, %v625
    %vm627 = vweird.f32 %v619
    %vm628 = vweird.f32 %v621
    %vm629 = vmor %vm627, %vm628
    %v630 = vsel %vm629, %v621, %v626
    %v631 = vrsqrt.pop %v620
    %v632 = vmul.f32 %v631, %v620
    %v633 = vmul.f32 %v632, %v631
    %v634 = vmul.f32 0.5, %v633
    %v635 = vsub.f32 1.5, %v634
    %v636 = vmul.f32 %v631, %v635
    %vm637 = vweird.f32 %v620
    %vm638 = vweird.f32 %v631
    %vm639 = vmor %vm637, %vm638
    %v640 = vsel %vm639, %v631, %v636
    %v641 = vmul.f32 %v607, %v630
    %v642 = vmul.f32 %v608, %v640
    %v644 = vperm.slane %v597, 0
    %v646 = vmul.f32 %v641, %v644
    %v647 = vmul.f32 %v642, %v644
    %v649 = vperm.slane %v598, 0
    %v651 = vadd.f32 %v646, %v649
    %v652 = vadd.f32 %v647, %v649
    %v653 = vpack.c.bf16 %v652, %v651
    %v654 = vld [vmem:[%s10] sm:$0xf]
    %v655 = vld [vmem:[%s10 + $0x4] sm:$0xf]
    %v656 = vld [vmem:[%s10 + $0x8] sm:$0xf]
    %v657 = vld [vmem:[%s10 + $0xc] sm:$0xf]
    %v658 = vld [vmem:[%s11] sm:$0x1]
    %v660 = vperm.slane %v658, 0
    %v666 = vunpack.c.l.b16 %v654
    %v667 = vunpack.c.l.b16 %v655
    %v668 = vunpack.c.l.b16 %v656
    %v669 = vunpack.c.l.b16 %v657
    %v670 = vpack.c.b16 %v667, %v666
    %v671 = vpack.c.b16 %v669, %v668
    %v675 = vsel %vm73, %v653, 0
    %677 = vmatpush.bf16.msra.mxu0 0
    %678 = vmatpush.bf16.msra.mxu0 0
    %679 = vmatpush.bf16.msra.mxu0 0
    %680 = vmatpush.bf16.msra.mxu0 0
    %681 = vmatpush.bf16.msra.mxu0 0
    %682 = vmatpush.bf16.msra.mxu0 0
    %683 = vmatpush.bf16.msra.mxu0 %v671
    %684 = vmatpush.bf16.msra.mxu0 %v670
    %685 = vmatmul.bf16.gmra.mxu0 %v675
    %v686 = vpop.f32.mrf.mxu0
    %v687 = vadd.f32 %v660, %v686
    %v688 = vpop.f32.mrf.mxu0
    %v689 = vadd.f32 %v660, %v688
    %690 = vdwg.mxu0
    %v691 = vmul.f32 %v687, 0.5
    %v692 = vmul.f32 %v689, 0.5
    %v693 = vmul.f32 %v687, 0.044715
    %v694 = vmul.f32 %v689, 0.044715
    %v695 = vmul.f32 %v693, %v687
    %v696 = vmul.f32 %v694, %v689
    %v697 = vmul.f32 %v695, %v687
    %v698 = vmul.f32 %v696, %v689
    %v699 = vadd.f32 %v687, %v697
    %v700 = vadd.f32 %v689, %v698
    %v701 = vmul.f32 %v699, 0.7978846
    %v702 = vmul.f32 %v700, 0.7978846
    %v703 = vtanh.pop %v701
    %v704 = vtanh.pop %v702
    %v705 = vadd.f32 %v703, 1.0
    %v706 = vadd.f32 %v704, 1.0
    %v707 = vmul.f32 %v691, %v705
    %v708 = vmul.f32 %v692, %v706
    %v709 = vpack.c.bf16 %v708, %v707
    %v710 = vld [vmem:[%s12] sm:$0xf]
    %v711 = vld [vmem:[%s12 + $0x4] sm:$0xf]
    %v712 = vld [vmem:[%s12 + $0x8] sm:$0xf]
    %v713 = vld [vmem:[%s12 + $0xc] sm:$0xf]
    %v714 = vld [vmem:[%s12 + $0x10] sm:$0xf]
    %v715 = vld [vmem:[%s12 + $0x14] sm:$0xf]
    %v716 = vld [vmem:[%s12 + $0x18] sm:$0xf]
    %v717 = vld [vmem:[%s12 + $0x1c] sm:$0xf]
    %v718 = vld [vmem:[%s12 + $0x20] sm:$0xf]
    %v719 = vld [vmem:[%s12 + $0x24] sm:$0xf]
    %v720 = vld [vmem:[%s12 + $0x28] sm:$0xf]
    %v721 = vld [vmem:[%s12 + $0x2c] sm:$0xf]
    %v722 = vld [vmem:[%s12 + $0x30] sm:$0xf]
    %v723 = vld [vmem:[%s12 + $0x34] sm:$0xf]
    %v724 = vld [vmem:[%s12 + $0x38] sm:$0xf]
    %v725 = vld [vmem:[%s12 + $0x3c] sm:$0xf]
    %v726 = vld [vmem:[%s13] sm:$0x1]
    %v728 = vperm.slane %v726, 0
    %v746 = vunpack.c.l.b16 %v710
    %v747 = vunpack.c.l.b16 %v711
    %v748 = vunpack.c.l.b16 %v712
    %v749 = vunpack.c.l.b16 %v713
    %v750 = vunpack.c.l.b16 %v714
    %v751 = vunpack.c.l.b16 %v715
    %v752 = vunpack.c.l.b16 %v716
    %v753 = vunpack.c.l.b16 %v717
    %v754 = vunpack.c.l.b16 %v718
    %v755 = vunpack.c.l.b16 %v719
    %v756 = vunpack.c.l.b16 %v720
    %v757 = vunpack.c.l.b16 %v721
    %v758 = vunpack.c.l.b16 %v722
    %v759 = vunpack.c.l.b16 %v723
    %v760 = vunpack.c.l.b16 %v724
    %v761 = vunpack.c.l.b16 %v725
    %v762 = vpack.c.b16 %v747, %v746
    %v763 = vpack.c.b16 %v749, %v748
    %v764 = vpack.c.b16 %v751, %v750
    %v765 = vpack.c.b16 %v753, %v752
    %v766 = vpack.c.b16 %v755, %v754
    %v767 = vpack.c.b16 %v757, %v756
    %v768 = vpack.c.b16 %v759, %v758
    %v769 = vpack.c.b16 %v761, %v760
    %778 = vmatpush.bf16.msra.mxu0 %v769
    %779 = vmatpush.bf16.msra.mxu0 %v768
    %780 = vmatpush.bf16.msra.mxu0 %v767
    %781 = vmatpush.bf16.msra.mxu0 %v766
    %782 = vmatpush.bf16.msra.mxu0 %v765
    %783 = vmatpush.bf16.msra.mxu0 %v764
    %784 = vmatpush.bf16.msra.mxu0 %v763
    %785 = vmatpush.bf16.msra.mxu0 %v762
    %786 = vmatmul.bf16.gmra.mxu0 %v709
    %v787 = vpop.f32.mrf.mxu0
    %v788 = vadd.f32 %v728, %v787
    %v789 = vpop.f32.mrf.mxu0
    %v790 = vadd.f32 %v728, %v789
    %791 = vdwg.mxu0
    %v792 = vadd.f32 %v651, %v788
    %v793 = vadd.f32 %v652, %v790
    %v794 = vld [vmem:[%s14] sm:$0x1]
    %v795 = vld [vmem:[%s15] sm:$0x1]
    %v796 = vsel %vm73, %v792, 0.0
    %797 = vadd.xlane.f32.xlu0 %v796
    %v798 = vpop.xlane.xlu0 %797
    %v799 = vsel %vm73, %v793, 0.0
    %800 = vadd.xlane.f32.xlu0 %v799
    %v801 = vpop.xlane.xlu0 %800
    %v802 = vmul.f32 %v798, %v86
    %v803 = vmul.f32 %v801, %v86
    %v804 = vsub.f32 %v792, %v802
    %v805 = vsub.f32 %v793, %v803
    %v806 = vmul.f32 %v804, %v804
    %v807 = vmul.f32 %v805, %v805
    %v808 = vsel %vm73, %v806, 0.0
    %809 = vadd.xlane.f32.xlu0 %v808
    %v810 = vpop.xlane.xlu0 %809
    %v811 = vsel %vm73, %v807, 0.0
    %812 = vadd.xlane.f32.xlu0 %v811
    %v813 = vpop.xlane.xlu0 %812
    %v814 = vmul.f32 %v810, %v86
    %v815 = vmul.f32 %v813, %v86
    %v816 = vadd.f32 %v814, 1e-12
    %v817 = vadd.f32 %v815, 1e-12
    %v818 = vrsqrt.pop %v816
    %v819 = vmul.f32 %v818, %v816
    %v820 = vmul.f32 %v819, %v818
    %v821 = vmul.f32 0.5, %v820
    %v822 = vsub.f32 1.5, %v821
    %v823 = vmul.f32 %v818, %v822
    %vm824 = vweird.f32 %v816
    %vm825 = vweird.f32 %v818
    %vm826 = vmor %vm824, %vm825
    %v827 = vsel %vm826, %v818, %v823
    %v828 = vrsqrt.pop %v817
    %v829 = vmul.f32 %v828, %v817
    %v830 = vmul.f32 %v829, %v828
    %v831 = vmul.f32 0.5, %v830
    %v832 = vsub.f32 1.5, %v831
    %v833 = vmul.f32 %v828, %v832
    %vm834 = vweird.f32 %v817
    %vm835 = vweird.f32 %v828
    %vm836 = vmor %vm834, %vm835
    %v837 = vsel %vm836, %v828, %v833
    %v838 = vmul.f32 %v804, %v827
    %v839 = vmul.f32 %v805, %v837
    %v841 = vperm.slane %v794, 0
    %v843 = vmul.f32 %v838, %v841
    %v844 = vmul.f32 %v839, %v841
    %v846 = vperm.slane %v795, 0
    %v848 = vadd.f32 %v843, %v846
    %v849 = vadd.f32 %v844, %v846
    %v850 = vpack.c.bf16 %v849, %v848
    %s851 = scalar_lea.vmem %s4, 48
    %v852 = vld [vmem:[%s851] sm:$0xff]
    %v853 = vld [vmem:[%s851 + $0x8] sm:$0xf]
    %v854 = vld [vmem:[%s851 + $0xc] sm:$0xff]
    %v855 = vld [vmem:[%s851 + $0x14] sm:$0xf]
    %v856 = vld [vmem:[%s851 + $0x18] sm:$0xff]
    %v857 = vld [vmem:[%s851 + $0x20] sm:$0xf]
    %v858 = vld [vmem:[%s851 + $0x24] sm:$0xff]
    %v859 = vld [vmem:[%s851 + $0x2c] sm:$0xf]
    %s860 = scalar_lea.vmem %s5, 3
    %v861 = vld [vmem:[%s860] sm:$0x7]
    %v863 = vperm.slane %v861, 0
    %v864 = vperm.slane %v861, 1
    %v865 = vperm.slane %v861, 2
    %v877 = vunpack.c.l.b16 %v852
    %v878 = vunpack.c.h.b16 %v852
    %v879 = vunpack.c.l.b16 %v853
    %v880 = vunpack.c.l.b16 %v854
    %v881 = vunpack.c.h.b16 %v854
    %v882 = vunpack.c.l.b16 %v855
    %v883 = vunpack.c.l.b16 %v856
    %v884 = vunpack.c.h.b16 %v856
    %v885 = vunpack.c.l.b16 %v857
    %v886 = vunpack.c.l.b16 %v858
    %v887 = vunpack.c.h.b16 %v858
    %v888 = vunpack.c.l.b16 %v859
    %v889 = vpack.c.b16 %v880, %v877
    %v890 = vpack.c.b16 %v881, %v878
    %v891 = vpack.c.b16 %v882, %v879
    %v892 = vpack.c.b16 %v886, %v883
    %v893 = vpack.c.b16 %v887, %v884
    %v894 = vpack.c.b16 %v888, %v885
    %v902 = vsel %vm73, %v850, 0
    %904 = vmatpush.bf16.msra.mxu0 0
    %905 = vmatpush.bf16.msra.mxu0 0
    %906 = vmatpush.bf16.msra.mxu0 0
    %907 = vmatpush.bf16.msra.mxu0 0
    %908 = vmatpush.bf16.msra.mxu0 0
    %909 = vmatpush.bf16.msra.mxu0 0
    %910 = vmatpush.bf16.msra.mxu0 %v892
    %911 = vmatpush.bf16.msra.mxu0 %v889
    %912 = vmatmul.bf16.gmra.mxu0 %v902
    %v913 = vpop.f32.mrf.mxu0
    %v914 = vadd.f32 %v863, %v913
    %v915 = vpop.f32.mrf.mxu0
    %v916 = vadd.f32 %v863, %v915
    %917 = vdwg.mxu0
    %918 = vmatpush.bf16.msra.mxu0 0
    %919 = vmatpush.bf16.msra.mxu0 0
    %920 = vmatpush.bf16.msra.mxu0 0
    %921 = vmatpush.bf16.msra.mxu0 0
    %922 = vmatpush.bf16.msra.mxu0 0
    %923 = vmatpush.bf16.msra.mxu0 0
    %924 = vmatpush.bf16.msra.mxu0 %v893
    %925 = vmatpush.bf16.msra.mxu0 %v890
    %926 = vmatmul.bf16.gmra.mxu0 %v902
    %v927 = vpop.f32.mrf.mxu0
    %v928 = vadd.f32 %v864, %v927
    %v929 = vpop.f32.mrf.mxu0
    %v930 = vadd.f32 %v864, %v929
    %931 = vdwg.mxu0
    %932 = vmatpush.bf16.msra.mxu0 0
    %933 = vmatpush.bf16.msra.mxu0 0
    %934 = vmatpush.bf16.msra.mxu0 0
    %935 = vmatpush.bf16.msra.mxu0 0
    %936 = vmatpush.bf16.msra.mxu0 0
    %937 = vmatpush.bf16.msra.mxu0 0
    %938 = vmatpush.bf16.msra.mxu0 %v894
    %939 = vmatpush.bf16.msra.mxu0 %v891
    %940 = vmatmul.bf16.gmra.mxu0 %v902
    %v941 = vpop.f32.mrf.mxu0
    %v942 = vadd.f32 %v865, %v941
    %v943 = vpop.f32.mrf.mxu0
    %v944 = vadd.f32 %v865, %v943
    %945 = vdwg.mxu0
    %v946 = vpack.c.bf16 %v928, %v914
    %v947 = vpack.c.bf16 %v942, %v942
    %v948 = vpack.c.bf16 %v930, %v916
    %v949 = vpack.c.bf16 %v944, %v944
    %v952 = vunpack.c.l.b16 %v946
    %v953 = vunpack.c.l.b16 %v948
    %v954 = vpack.c.b16 %v953, %v952
    %v955 = vunpack.c.h.b16 %v946
    %v956 = vunpack.c.h.b16 %v948
    %v957 = vpack.c.b16 %v956, %v955
    %v959 = vsel %vm241, %v954, 0
    %v962 = vsel %vm241, %v957, 0
    %964 = vmatpush.bf16.xpose.msra.mxu0 0
    %965 = vmatpush.bf16.xpose.msra.mxu0 0
    %966 = vmatpush.bf16.xpose.msra.mxu0 0
    %967 = vmatpush.bf16.xpose.msra.mxu0 0
    %968 = vmatpush.bf16.xpose.msra.mxu0 0
    %969 = vmatpush.bf16.xpose.msra.mxu0 0
    %970 = vmatpush.bf16.xpose.msra.mxu0 0
    %971 = vmatpush.bf16.xpose.msra.mxu0 %v962
    %972 = vmatmul.bf16.gmra.mxu0 %v959
    %v973 = vpop.f32.mrf.mxu0
    %v974 = vadd.f32 0.0, %v973
    %v975 = vpop.f32.mrf.mxu0
    %v976 = vadd.f32 0.0, %v975
    %977 = vdwg.mxu0
    %v978 = vmul.f32 %v974, 0.35355338
    %v979 = vmul.f32 %v976, 0.35355338
    %v980 = vadd.f32 %v978, %v67
    %v981 = vadd.f32 %v979, %v68
    %v982 = vsel %vm266, %v980, -inf
    %983 = vmax.xlane.f32.xlu0 %v982
    %v984 = vpop.xlane.xlu0 %983
    %v985 = vsel %vm266, %v981, -inf
    %986 = vmax.xlane.f32.xlu0 %v985
    %v987 = vpop.xlane.xlu0 %986
    %v988 = vsub.f32 %v980, %v984
    %v989 = vsub.f32 %v981, %v987
    %v990 = vmul.f32 %v988, 1.442695
    %v991 = vpow.pop %v990
    %v992 = vmul.f32 %v989, 1.442695
    %v993 = vpow.pop %v992
    %v994 = vsel %vm266, %v991, 0.0
    %995 = vadd.xlane.f32.xlu0 %v994
    %v996 = vpop.xlane.xlu0 %995
    %v997 = vsel %vm266, %v993, 0.0
    %998 = vadd.xlane.f32.xlu0 %v997
    %v999 = vpop.xlane.xlu0 %998
    %v1000 = vrcp.pop %v996
    %v1001 = vrcp.pop %v999
    %v1002 = vmul.f32 %v991, %v1000
    %v1003 = vmul.f32 %v993, %v1001
    %v1004 = vpack.c.bf16 %v1003, %v1002
    %v1007 = vunpack.c.l.b16 %v947
    %v1008 = vunpack.c.l.b16 %v949
    %v1009 = vpack.c.b16 %v1008, %v1007
    %v1012 = vsel %vm266, %v1004, 0
    %1014 = vmatpush.bf16.msra.mxu0 0
    %1015 = vmatpush.bf16.msra.mxu0 0
    %1016 = vmatpush.bf16.msra.mxu0 0
    %1017 = vmatpush.bf16.msra.mxu0 0
    %1018 = vmatpush.bf16.msra.mxu0 0
    %1019 = vmatpush.bf16.msra.mxu0 0
    %1020 = vmatpush.bf16.msra.mxu0 0
    %1021 = vmatpush.bf16.msra.mxu0 %v1009
    %1022 = vmatmul.bf16.gmra.mxu0 %v1012
    %v1023 = vpop.f32.mrf.mxu0
    %v1024 = vadd.f32 0.0, %v1023
    %v1025 = vpop.f32.mrf.mxu0
    %v1026 = vadd.f32 0.0, %v1025
    %1027 = vdwg.mxu0
    %1028 = vrot.lane.b32.xlu0 %v954, 120
    %v1029 = vpop.permute.xlu0 %1028
    %1030 = vrot.lane.b32.xlu0 %v957, 120
    %v1031 = vpop.permute.xlu0 %1030
    %v1033 = vsel %vm241, %v1029, 0
    %v1036 = vsel %vm241, %v1031, 0
    %1038 = vmatpush.bf16.xpose.msra.mxu0 0
    %1039 = vmatpush.bf16.xpose.msra.mxu0 0
    %1040 = vmatpush.bf16.xpose.msra.mxu0 0
    %1041 = vmatpush.bf16.xpose.msra.mxu0 0
    %1042 = vmatpush.bf16.xpose.msra.mxu0 0
    %1043 = vmatpush.bf16.xpose.msra.mxu0 0
    %1044 = vmatpush.bf16.xpose.msra.mxu0 0
    %1045 = vmatpush.bf16.xpose.msra.mxu0 %v1036
    %1046 = vmatmul.bf16.gmra.mxu0 %v1033
    %v1047 = vpop.f32.mrf.mxu0
    %v1048 = vadd.f32 0.0, %v1047
    %v1049 = vpop.f32.mrf.mxu0
    %v1050 = vadd.f32 0.0, %v1049
    %1051 = vdwg.mxu0
    %v1052 = vmul.f32 %v1048, 0.35355338
    %v1053 = vmul.f32 %v1050, 0.35355338
    %v1054 = vadd.f32 %v1052, %v67
    %v1055 = vadd.f32 %v1053, %v68
    %v1056 = vsel %vm266, %v1054, -inf
    %1057 = vmax.xlane.f32.xlu0 %v1056
    %v1058 = vpop.xlane.xlu0 %1057
    %v1059 = vsel %vm266, %v1055, -inf
    %1060 = vmax.xlane.f32.xlu0 %v1059
    %v1061 = vpop.xlane.xlu0 %1060
    %v1062 = vsub.f32 %v1054, %v1058
    %v1063 = vsub.f32 %v1055, %v1061
    %v1064 = vmul.f32 %v1062, 1.442695
    %v1065 = vpow.pop %v1064
    %v1066 = vmul.f32 %v1063, 1.442695
    %v1067 = vpow.pop %v1066
    %v1068 = vsel %vm266, %v1065, 0.0
    %1069 = vadd.xlane.f32.xlu0 %v1068
    %v1070 = vpop.xlane.xlu0 %1069
    %v1071 = vsel %vm266, %v1067, 0.0
    %1072 = vadd.xlane.f32.xlu0 %v1071
    %v1073 = vpop.xlane.xlu0 %1072
    %v1074 = vrcp.pop %v1070
    %v1075 = vrcp.pop %v1073
    %v1076 = vmul.f32 %v1065, %v1074
    %v1077 = vmul.f32 %v1067, %v1075
    %v1078 = vpack.c.bf16 %v1077, %v1076
    %1079 = vrot.lane.b32.xlu0 %v1009, 120
    %v1080 = vpop.permute.xlu0 %1079
    %v1083 = vsel %vm266, %v1078, 0
    %1085 = vmatpush.bf16.msra.mxu0 0
    %1086 = vmatpush.bf16.msra.mxu0 0
    %1087 = vmatpush.bf16.msra.mxu0 0
    %1088 = vmatpush.bf16.msra.mxu0 0
    %1089 = vmatpush.bf16.msra.mxu0 0
    %1090 = vmatpush.bf16.msra.mxu0 0
    %1091 = vmatpush.bf16.msra.mxu0 0
    %1092 = vmatpush.bf16.msra.mxu0 %v1080
    %1093 = vmatmul.bf16.gmra.mxu0 %v1083
    %v1094 = vpop.f32.mrf.mxu0
    %v1095 = vadd.f32 0.0, %v1094
    %v1096 = vpop.f32.mrf.mxu0
    %v1097 = vadd.f32 0.0, %v1096
    %1098 = vdwg.mxu0
    %1099 = vrot.lane.b32.xlu0 %v954, 112
    %v1100 = vpop.permute.xlu0 %1099
    %1101 = vrot.lane.b32.xlu0 %v957, 112
    %v1102 = vpop.permute.xlu0 %1101
    %v1104 = vsel %vm241, %v1100, 0
    %v1107 = vsel %vm241, %v1102, 0
    %1109 = vmatpush.bf16.xpose.msra.mxu0 0
    %1110 = vmatpush.bf16.xpose.msra.mxu0 0
    %1111 = vmatpush.bf16.xpose.msra.mxu0 0
    %1112 = vmatpush.bf16.xpose.msra.mxu0 0
    %1113 = vmatpush.bf16.xpose.msra.mxu0 0
    %1114 = vmatpush.bf16.xpose.msra.mxu0 0
    %1115 = vmatpush.bf16.xpose.msra.mxu0 0
    %1116 = vmatpush.bf16.xpose.msra.mxu0 %v1107
    %1117 = vmatmul.bf16.gmra.mxu0 %v1104
    %v1118 = vpop.f32.mrf.mxu0
    %v1119 = vadd.f32 0.0, %v1118
    %v1120 = vpop.f32.mrf.mxu0
    %v1121 = vadd.f32 0.0, %v1120
    %1122 = vdwg.mxu0
    %v1123 = vmul.f32 %v1119, 0.35355338
    %v1124 = vmul.f32 %v1121, 0.35355338
    %v1125 = vadd.f32 %v1123, %v67
    %v1126 = vadd.f32 %v1124, %v68
    %v1127 = vsel %vm266, %v1125, -inf
    %1128 = vmax.xlane.f32.xlu0 %v1127
    %v1129 = vpop.xlane.xlu0 %1128
    %v1130 = vsel %vm266, %v1126, -inf
    %1131 = vmax.xlane.f32.xlu0 %v1130
    %v1132 = vpop.xlane.xlu0 %1131
    %v1133 = vsub.f32 %v1125, %v1129
    %v1134 = vsub.f32 %v1126, %v1132
    %v1135 = vmul.f32 %v1133, 1.442695
    %v1136 = vpow.pop %v1135
    %v1137 = vmul.f32 %v1134, 1.442695
    %v1138 = vpow.pop %v1137
    %v1139 = vsel %vm266, %v1136, 0.0
    %1140 = vadd.xlane.f32.xlu0 %v1139
    %v1141 = vpop.xlane.xlu0 %1140
    %v1142 = vsel %vm266, %v1138, 0.0
    %1143 = vadd.xlane.f32.xlu0 %v1142
    %v1144 = vpop.xlane.xlu0 %1143
    %v1145 = vrcp.pop %v1141
    %v1146 = vrcp.pop %v1144
    %v1147 = vmul.f32 %v1136, %v1145
    %v1148 = vmul.f32 %v1138, %v1146
    %v1149 = vpack.c.bf16 %v1148, %v1147
    %1150 = vrot.lane.b32.xlu0 %v1009, 112
    %v1151 = vpop.permute.xlu0 %1150
    %v1154 = vsel %vm266, %v1149, 0
    %1156 = vmatpush.bf16.msra.mxu0 0
    %1157 = vmatpush.bf16.msra.mxu0 0
    %1158 = vmatpush.bf16.msra.mxu0 0
    %1159 = vmatpush.bf16.msra.mxu0 0
    %1160 = vmatpush.bf16.msra.mxu0 0
    %1161 = vmatpush.bf16.msra.mxu0 0
    %1162 = vmatpush.bf16.msra.mxu0 0
    %1163 = vmatpush.bf16.msra.mxu0 %v1151
    %1164 = vmatmul.bf16.gmra.mxu0 %v1154
    %v1165 = vpop.f32.mrf.mxu0
    %v1166 = vadd.f32 0.0, %v1165
    %v1167 = vpop.f32.mrf.mxu0
    %v1168 = vadd.f32 0.0, %v1167
    %1169 = vdwg.mxu0
    %1170 = vrot.lane.b32.xlu0 %v954, 104
    %v1171 = vpop.permute.xlu0 %1170
    %1172 = vrot.lane.b32.xlu0 %v957, 104
    %v1173 = vpop.permute.xlu0 %1172
    %v1175 = vsel %vm241, %v1171, 0
    %v1178 = vsel %vm241, %v1173, 0
    %1180 = vmatpush.bf16.xpose.msra.mxu0 0
    %1181 = vmatpush.bf16.xpose.msra.mxu0 0
    %1182 = vmatpush.bf16.xpose.msra.mxu0 0
    %1183 = vmatpush.bf16.xpose.msra.mxu0 0
    %1184 = vmatpush.bf16.xpose.msra.mxu0 0
    %1185 = vmatpush.bf16.xpose.msra.mxu0 0
    %1186 = vmatpush.bf16.xpose.msra.mxu0 0
    %1187 = vmatpush.bf16.xpose.msra.mxu0 %v1178
    %1188 = vmatmul.bf16.gmra.mxu0 %v1175
    %v1189 = vpop.f32.mrf.mxu0
    %v1190 = vadd.f32 0.0, %v1189
    %v1191 = vpop.f32.mrf.mxu0
    %v1192 = vadd.f32 0.0, %v1191
    %1193 = vdwg.mxu0
    %v1194 = vmul.f32 %v1190, 0.35355338
    %v1195 = vmul.f32 %v1192, 0.35355338
    %v1196 = vadd.f32 %v1194, %v67
    %v1197 = vadd.f32 %v1195, %v68
    %v1198 = vsel %vm266, %v1196, -inf
    %1199 = vmax.xlane.f32.xlu0 %v1198
    %v1200 = vpop.xlane.xlu0 %1199
    %v1201 = vsel %vm266, %v1197, -inf
    %1202 = vmax.xlane.f32.xlu0 %v1201
    %v1203 = vpop.xlane.xlu0 %1202
    %v1204 = vsub.f32 %v1196, %v1200
    %v1205 = vsub.f32 %v1197, %v1203
    %v1206 = vmul.f32 %v1204, 1.442695
    %v1207 = vpow.pop %v1206
    %v1208 = vmul.f32 %v1205, 1.442695
    %v1209 = vpow.pop %v1208
    %v1210 = vsel %vm266, %v1207, 0.0
    %1211 = vadd.xlane.f32.xlu0 %v1210
    %v1212 = vpop.xlane.xlu0 %1211
    %v1213 = vsel %vm266, %v1209, 0.0
    %1214 = vadd.xlane.f32.xlu0 %v1213
    %v1215 = vpop.xlane.xlu0 %1214
    %v1216 = vrcp.pop %v1212
    %v1217 = vrcp.pop %v1215
    %v1218 = vmul.f32 %v1207, %v1216
    %v1219 = vmul.f32 %v1209, %v1217
    %v1220 = vpack.c.bf16 %v1219, %v1218
    %1221 = vrot.lane.b32.xlu0 %v1009, 104
    %v1222 = vpop.permute.xlu0 %1221
    %v1225 = vsel %vm266, %v1220, 0
    %1227 = vmatpush.bf16.msra.mxu0 0
    %1228 = vmatpush.bf16.msra.mxu0 0
    %1229 = vmatpush.bf16.msra.mxu0 0
    %1230 = vmatpush.bf16.msra.mxu0 0
    %1231 = vmatpush.bf16.msra.mxu0 0
    %1232 = vmatpush.bf16.msra.mxu0 0
    %1233 = vmatpush.bf16.msra.mxu0 0
    %1234 = vmatpush.bf16.msra.mxu0 %v1222
    %1235 = vmatmul.bf16.gmra.mxu0 %v1225
    %v1236 = vpop.f32.mrf.mxu0
    %v1237 = vadd.f32 0.0, %v1236
    %v1238 = vpop.f32.mrf.mxu0
    %v1239 = vadd.f32 0.0, %v1238
    %1240 = vdwg.mxu0
    %1243 = vrot.lane.b32.xlu0 %v1095, 8
    %v1244 = vpop.permute.xlu0 %1243
    %1245 = vrot.lane.b32.xlu0 %v1097, 8
    %v1246 = vpop.permute.xlu0 %1245
    %1251 = vrot.lane.b32.xlu0 %v1166, 16
    %v1252 = vpop.permute.xlu0 %1251
    %1253 = vrot.lane.b32.xlu0 %v1168, 16
    %v1254 = vpop.permute.xlu0 %1253
    %1259 = vrot.lane.b32.xlu0 %v1237, 24
    %v1260 = vpop.permute.xlu0 %1259
    %1261 = vrot.lane.b32.xlu0 %v1239, 24
    %v1262 = vpop.permute.xlu0 %1261
    %v1265 = vsel %vm241, %v1024, %v1244
    %v1266 = vsel %vm241, %v1026, %v1246
    %v1267 = vsel %vm266, %v1265, %v1252
    %v1268 = vsel %vm266, %v1266, %v1254
    %v1269 = vsel %vm554, %v1267, %v1260
    %v1270 = vsel %vm554, %v1268, %v1262
    %v1271 = vpack.c.bf16 %v1270, %v1269
    %s1272 = scalar_lea.vmem %s6, 16
    %v1273 = vld [vmem:[%s1272] sm:$0xf]
    %v1274 = vld [vmem:[%s1272 + $0x4] sm:$0xf]
    %v1275 = vld [vmem:[%s1272 + $0x8] sm:$0xf]
    %v1276 = vld [vmem:[%s1272 + $0xc] sm:$0xf]
    %s1277 = scalar_lea.vmem %s7, 1
    %v1278 = vld [vmem:[%s1277] sm:$0x1]
    %v1280 = vperm.slane %v1278, 0
    %v1286 = vunpack.c.l.b16 %v1273
    %v1287 = vunpack.c.l.b16 %v1274
    %v1288 = vunpack.c.l.b16 %v1275
    %v1289 = vunpack.c.l.b16 %v1276
    %v1290 = vpack.c.b16 %v1287, %v1286
    %v1291 = vpack.c.b16 %v1289, %v1288
    %v1295 = vsel %vm73, %v1271, 0
    %1297 = vmatpush.bf16.msra.mxu0 0
    %1298 = vmatpush.bf16.msra.mxu0 0
    %1299 = vmatpush.bf16.msra.mxu0 0
    %1300 = vmatpush.bf16.msra.mxu0 0
    %1301 = vmatpush.bf16.msra.mxu0 0
    %1302 = vmatpush.bf16.msra.mxu0 0
    %1303 = vmatpush.bf16.msra.mxu0 %v1291
    %1304 = vmatpush.bf16.msra.mxu0 %v1290
    %1305 = vmatmul.bf16.gmra.mxu0 %v1295
    %v1306 = vpop.f32.mrf.mxu0
    %v1307 = vadd.f32 %v1280, %v1306
    %v1308 = vpop.f32.mrf.mxu0
    %v1309 = vadd.f32 %v1280, %v1308
    %1310 = vdwg.mxu0
    %v1311 = vadd.f32 %v848, %v1307
    %v1312 = vadd.f32 %v849, %v1309
    %s1313 = scalar_lea.vmem %s8, 1
    %v1314 = vld [vmem:[%s1313] sm:$0x1]
    %s1315 = scalar_lea.vmem %s9, 1
    %v1316 = vld [vmem:[%s1315] sm:$0x1]
    %v1317 = vsel %vm73, %v1311, 0.0
    %1318 = vadd.xlane.f32.xlu0 %v1317
    %v1319 = vpop.xlane.xlu0 %1318
    %v1320 = vsel %vm73, %v1312, 0.0
    %1321 = vadd.xlane.f32.xlu0 %v1320
    %v1322 = vpop.xlane.xlu0 %1321
    %v1323 = vmul.f32 %v1319, %v86
    %v1324 = vmul.f32 %v1322, %v86
    %v1325 = vsub.f32 %v1311, %v1323
    %v1326 = vsub.f32 %v1312, %v1324
    %v1327 = vmul.f32 %v1325, %v1325
    %v1328 = vmul.f32 %v1326, %v1326
    %v1329 = vsel %vm73, %v1327, 0.0
    %1330 = vadd.xlane.f32.xlu0 %v1329
    %v1331 = vpop.xlane.xlu0 %1330
    %v1332 = vsel %vm73, %v1328, 0.0
    %1333 = vadd.xlane.f32.xlu0 %v1332
    %v1334 = vpop.xlane.xlu0 %1333
    %v1335 = vmul.f32 %v1331, %v86
    %v1336 = vmul.f32 %v1334, %v86
    %v1337 = vadd.f32 %v1335, 1e-12
    %v1338 = vadd.f32 %v1336, 1e-12
    %v1339 = vrsqrt.pop %v1337
    %v1340 = vmul.f32 %v1339, %v1337
    %v1341 = vmul.f32 %v1340, %v1339
    %v1342 = vmul.f32 0.5, %v1341
    %v1343 = vsub.f32 1.5, %v1342
    %v1344 = vmul.f32 %v1339, %v1343
    %vm1345 = vweird.f32 %v1337
    %vm1346 = vweird.f32 %v1339
    %vm1347 = vmor %vm1345, %vm1346
    %v1348 = vsel %vm1347, %v1339, %v1344
    %v1349 = vrsqrt.pop %v1338
    %v1350 = vmul.f32 %v1349, %v1338
    %v1351 = vmul.f32 %v1350, %v1349
    %v1352 = vmul.f32 0.5, %v1351
    %v1353 = vsub.f32 1.5, %v1352
    %v1354 = vmul.f32 %v1349, %v1353
    %vm1355 = vweird.f32 %v1338
    %vm1356 = vweird.f32 %v1349
    %vm1357 = vmor %vm1355, %vm1356
    %v1358 = vsel %vm1357, %v1349, %v1354
    %v1359 = vmul.f32 %v1325, %v1348
    %v1360 = vmul.f32 %v1326, %v1358
    %v1362 = vperm.slane %v1314, 0
    %v1364 = vmul.f32 %v1359, %v1362
    %v1365 = vmul.f32 %v1360, %v1362
    %v1367 = vperm.slane %v1316, 0
    %v1369 = vadd.f32 %v1364, %v1367
    %v1370 = vadd.f32 %v1365, %v1367
    %v1371 = vpack.c.bf16 %v1370, %v1369
    %s1372 = scalar_lea.vmem %s10, 16
    %v1373 = vld [vmem:[%s1372] sm:$0xf]
    %v1374 = vld [vmem:[%s1372 + $0x4] sm:$0xf]
    %v1375 = vld [vmem:[%s1372 + $0x8] sm:$0xf]
    %v1376 = vld [vmem:[%s1372 + $0xc] sm:$0xf]
    %s1377 = scalar_lea.vmem %s11, 1
    %v1378 = vld [vmem:[%s1377] sm:$0x1]
    %v1380 = vperm.slane %v1378, 0
    %v1386 = vunpack.c.l.b16 %v1373
    %v1387 = vunpack.c.l.b16 %v1374
    %v1388 = vunpack.c.l.b16 %v1375
    %v1389 = vunpack.c.l.b16 %v1376
    %v1390 = vpack.c.b16 %v1387, %v1386
    %v1391 = vpack.c.b16 %v1389, %v1388
    %v1395 = vsel %vm73, %v1371, 0
    %1397 = vmatpush.bf16.msra.mxu0 0
    %1398 = vmatpush.bf16.msra.mxu0 0
    %1399 = vmatpush.bf16.msra.mxu0 0
    %1400 = vmatpush.bf16.msra.mxu0 0
    %1401 = vmatpush.bf16.msra.mxu0 0
    %1402 = vmatpush.bf16.msra.mxu0 0
    %1403 = vmatpush.bf16.msra.mxu0 %v1391
    %1404 = vmatpush.bf16.msra.mxu0 %v1390
    %1405 = vmatmul.bf16.gmra.mxu0 %v1395
    %v1406 = vpop.f32.mrf.mxu0
    %v1407 = vadd.f32 %v1380, %v1406
    %v1408 = vpop.f32.mrf.mxu0
    %v1409 = vadd.f32 %v1380, %v1408
    %1410 = vdwg.mxu0
    %v1411 = vmul.f32 %v1407, 0.5
    %v1412 = vmul.f32 %v1409, 0.5
    %v1413 = vmul.f32 %v1407, 0.044715
    %v1414 = vmul.f32 %v1409, 0.044715
    %v1415 = vmul.f32 %v1413, %v1407
    %v1416 = vmul.f32 %v1414, %v1409
    %v1417 = vmul.f32 %v1415, %v1407
    %v1418 = vmul.f32 %v1416, %v1409
    %v1419 = vadd.f32 %v1407, %v1417
    %v1420 = vadd.f32 %v1409, %v1418
    %v1421 = vmul.f32 %v1419, 0.7978846
    %v1422 = vmul.f32 %v1420, 0.7978846
    %v1423 = vtanh.pop %v1421
    %v1424 = vtanh.pop %v1422
    %v1425 = vadd.f32 %v1423, 1.0
    %v1426 = vadd.f32 %v1424, 1.0
    %v1427 = vmul.f32 %v1411, %v1425
    %v1428 = vmul.f32 %v1412, %v1426
    %v1429 = vpack.c.bf16 %v1428, %v1427
    %s1430 = scalar_lea.vmem %s12, 64
    %v1431 = vld [vmem:[%s1430] sm:$0xf]
    %v1432 = vld [vmem:[%s1430 + $0x4] sm:$0xf]
    %v1433 = vld [vmem:[%s1430 + $0x8] sm:$0xf]
    %v1434 = vld [vmem:[%s1430 + $0xc] sm:$0xf]
    %v1435 = vld [vmem:[%s1430 + $0x10] sm:$0xf]
    %v1436 = vld [vmem:[%s1430 + $0x14] sm:$0xf]
    %v1437 = vld [vmem:[%s1430 + $0x18] sm:$0xf]
    %v1438 = vld [vmem:[%s1430 + $0x1c] sm:$0xf]
    %v1439 = vld [vmem:[%s1430 + $0x20] sm:$0xf]
    %v1440 = vld [vmem:[%s1430 + $0x24] sm:$0xf]
    %v1441 = vld [vmem:[%s1430 + $0x28] sm:$0xf]
    %v1442 = vld [vmem:[%s1430 + $0x2c] sm:$0xf]
    %v1443 = vld [vmem:[%s1430 + $0x30] sm:$0xf]
    %v1444 = vld [vmem:[%s1430 + $0x34] sm:$0xf]
    %v1445 = vld [vmem:[%s1430 + $0x38] sm:$0xf]
    %v1446 = vld [vmem:[%s1430 + $0x3c] sm:$0xf]
    %s1447 = scalar_lea.vmem %s13, 1
    %v1448 = vld [vmem:[%s1447] sm:$0x1]
    %v1450 = vperm.slane %v1448, 0
    %v1468 = vunpack.c.l.b16 %v1431
    %v1469 = vunpack.c.l.b16 %v1432
    %v1470 = vunpack.c.l.b16 %v1433
    %v1471 = vunpack.c.l.b16 %v1434
    %v1472 = vunpack.c.l.b16 %v1435
    %v1473 = vunpack.c.l.b16 %v1436
    %v1474 = vunpack.c.l.b16 %v1437
    %v1475 = vunpack.c.l.b16 %v1438
    %v1476 = vunpack.c.l.b16 %v1439
    %v1477 = vunpack.c.l.b16 %v1440
    %v1478 = vunpack.c.l.b16 %v1441
    %v1479 = vunpack.c.l.b16 %v1442
    %v1480 = vunpack.c.l.b16 %v1443
    %v1481 = vunpack.c.l.b16 %v1444
    %v1482 = vunpack.c.l.b16 %v1445
    %v1483 = vunpack.c.l.b16 %v1446
    %v1484 = vpack.c.b16 %v1469, %v1468
    %v1485 = vpack.c.b16 %v1471, %v1470
    %v1486 = vpack.c.b16 %v1473, %v1472
    %v1487 = vpack.c.b16 %v1475, %v1474
    %v1488 = vpack.c.b16 %v1477, %v1476
    %v1489 = vpack.c.b16 %v1479, %v1478
    %v1490 = vpack.c.b16 %v1481, %v1480
    %v1491 = vpack.c.b16 %v1483, %v1482
    %1500 = vmatpush.bf16.msra.mxu0 %v1491
    %1501 = vmatpush.bf16.msra.mxu0 %v1490
    %1502 = vmatpush.bf16.msra.mxu0 %v1489
    %1503 = vmatpush.bf16.msra.mxu0 %v1488
    %1504 = vmatpush.bf16.msra.mxu0 %v1487
    %1505 = vmatpush.bf16.msra.mxu0 %v1486
    %1506 = vmatpush.bf16.msra.mxu0 %v1485
    %1507 = vmatpush.bf16.msra.mxu0 %v1484
    %1508 = vmatmul.bf16.gmra.mxu0 %v1429
    %v1509 = vpop.f32.mrf.mxu0
    %v1510 = vadd.f32 %v1450, %v1509
    %v1511 = vpop.f32.mrf.mxu0
    %v1512 = vadd.f32 %v1450, %v1511
    %1513 = vdwg.mxu0
    %v1514 = vadd.f32 %v1369, %v1510
    %v1515 = vadd.f32 %v1370, %v1512
    %s1516 = scalar_lea.vmem %s14, 1
    %v1517 = vld [vmem:[%s1516] sm:$0x1]
    %s1518 = scalar_lea.vmem %s15, 1
    %v1519 = vld [vmem:[%s1518] sm:$0x1]
    %v1520 = vsel %vm73, %v1514, 0.0
    %1521 = vadd.xlane.f32.xlu0 %v1520
    %v1522 = vpop.xlane.xlu0 %1521
    %v1523 = vsel %vm73, %v1515, 0.0
    %1524 = vadd.xlane.f32.xlu0 %v1523
    %v1525 = vpop.xlane.xlu0 %1524
    %v1526 = vmul.f32 %v1522, %v86
    %v1527 = vmul.f32 %v1525, %v86
    %v1528 = vsub.f32 %v1514, %v1526
    %v1529 = vsub.f32 %v1515, %v1527
    %v1530 = vmul.f32 %v1528, %v1528
    %v1531 = vmul.f32 %v1529, %v1529
    %v1532 = vsel %vm73, %v1530, 0.0
    %1533 = vadd.xlane.f32.xlu0 %v1532
    %v1534 = vpop.xlane.xlu0 %1533
    %v1535 = vsel %vm73, %v1531, 0.0
    %1536 = vadd.xlane.f32.xlu0 %v1535
    %v1537 = vpop.xlane.xlu0 %1536
    %v1538 = vmul.f32 %v1534, %v86
    %v1539 = vmul.f32 %v1537, %v86
    %v1540 = vadd.f32 %v1538, 1e-12
    %v1541 = vadd.f32 %v1539, 1e-12
    %v1542 = vrsqrt.pop %v1540
    %v1543 = vmul.f32 %v1542, %v1540
    %v1544 = vmul.f32 %v1543, %v1542
    %v1545 = vmul.f32 0.5, %v1544
    %v1546 = vsub.f32 1.5, %v1545
    %v1547 = vmul.f32 %v1542, %v1546
    %vm1548 = vweird.f32 %v1540
    %vm1549 = vweird.f32 %v1542
    %vm1550 = vmor %vm1548, %vm1549
    %v1551 = vsel %vm1550, %v1542, %v1547
    %v1552 = vrsqrt.pop %v1541
    %v1553 = vmul.f32 %v1552, %v1541
    %v1554 = vmul.f32 %v1553, %v1552
    %v1555 = vmul.f32 0.5, %v1554
    %v1556 = vsub.f32 1.5, %v1555
    %v1557 = vmul.f32 %v1552, %v1556
    %vm1558 = vweird.f32 %v1541
    %vm1559 = vweird.f32 %v1552
    %vm1560 = vmor %vm1558, %vm1559
    %v1561 = vsel %vm1560, %v1552, %v1557
    %v1562 = vmul.f32 %v1528, %v1551
    %v1563 = vmul.f32 %v1529, %v1561
    %v1565 = vperm.slane %v1517, 0
    %v1567 = vmul.f32 %v1562, %v1565
    %v1568 = vmul.f32 %v1563, %v1565
    %v1570 = vperm.slane %v1519, 0
    %v1572 = vadd.f32 %v1567, %v1570
    %v1573 = vadd.f32 %v1568, %v1570
    %v1575 = vrot.slane %v1573, 7
    %vm1577 = vcmask 1040384
    %v1578 = vsel %vm1577, %v1572, %v1575
    %v1579 = vpack.c.bf16 %v1578, %v1578
    %v1580 = vld [vmem:[%s16] sm:$0xf]
    %v1581 = vld [vmem:[%s16 + $0x4] sm:$0xf]
    %v1582 = vld [vmem:[%s16 + $0x8] sm:$0xf]
    %v1583 = vld [vmem:[%s16 + $0xc] sm:$0xf]
    %v1584 = vld [vmem:[%s17] sm:$0x1]
    %v1586 = vperm.slane %v1584, 0
    %v1592 = vunpack.c.l.b16 %v1580
    %v1593 = vunpack.c.l.b16 %v1581
    %v1594 = vunpack.c.l.b16 %v1582
    %v1595 = vunpack.c.l.b16 %v1583
    %v1596 = vpack.c.b16 %v1593, %v1592
    %v1597 = vpack.c.b16 %v1595, %v1594
    %v1601 = vsel %vm73, %v1579, 0
    %1603 = vmatpush.bf16.msra.mxu0 0
    %1604 = vmatpush.bf16.msra.mxu0 0
    %1605 = vmatpush.bf16.msra.mxu0 0
    %1606 = vmatpush.bf16.msra.mxu0 0
    %1607 = vmatpush.bf16.msra.mxu0 0
    %1608 = vmatpush.bf16.msra.mxu0 0
    %1609 = vmatpush.bf16.msra.mxu0 %v1597
    %1610 = vmatpush.bf16.msra.mxu0 %v1596
    %1611 = vmatmul.bf16.gmra.mxu0 %v1601
    %v1612 = vpop.f32.mrf.mxu0
    %v1613 = vadd.f32 %v1586, %v1612
    %v1614 = vpop.f32.mrf.mxu0
    %1615 = vdwg.mxu0
    %v1616 = vtanh.pop %v1613
    %v1617 = vpack.c.bf16 %v1616, %v1616
    %v1618 = vld [vmem:[%s18] sm:$0xf]
    %v1619 = vld [vmem:[%s18 + $0x4] sm:$0xf]
    %v1620 = vld [vmem:[%s18 + $0x8] sm:$0xf]
    %v1621 = vld [vmem:[%s18 + $0xc] sm:$0xf]
    %v1622 = vld [vmem:[%s19] sm:$0x1]
    %v1624 = vperm.slane %v1622, 0
    %v1630 = vunpack.c.l.b16 %v1618
    %v1631 = vunpack.c.l.b16 %v1619
    %v1632 = vunpack.c.l.b16 %v1620
    %v1633 = vunpack.c.l.b16 %v1621
    %v1634 = vpack.c.b16 %v1631, %v1630
    %v1635 = vpack.c.b16 %v1633, %v1632
    %v1639 = vsel %vm73, %v1617, 0
    %1641 = vmatpush.bf16.msra.mxu0 0
    %1642 = vmatpush.bf16.msra.mxu0 0
    %1643 = vmatpush.bf16.msra.mxu0 0
    %1644 = vmatpush.bf16.msra.mxu0 0
    %1645 = vmatpush.bf16.msra.mxu0 0
    %1646 = vmatpush.bf16.msra.mxu0 0
    %1647 = vmatpush.bf16.msra.mxu0 %v1635
    %1648 = vmatpush.bf16.msra.mxu0 %v1634
    %1649 = vmatmul.bf16.gmra.mxu0 %v1639
    %v1650 = vpop.f32.mrf.mxu0
    %v1651 = vadd.f32 %v1624, %v1650
    %v1652 = vpop.f32.mrf.mxu0
    %1653 = vdwg.mxu0
    %1654 = vst [vmem:[#allocation2] sm:$0x3] %v1651
    // Predicated region
    $region82: #{sentiment_classifier_forward.1} parent=1 // pred_check
      _
    $region83: #{sentiment_classifier_forward.1} parent=1 // pred_check_branch
      %1656 = sbr.rel (0) target = $region85
    $region84: #{sentiment_classifier_forward.1} parent=1 // pred_region
      %1658 = vsyncadd [#allocation3], 0
      %s1660 = sshll.u32 [#allocation2], 4
      %s1661 = int_to_ptr.vmem [resolvable:$true] %s1660
      %s1662 = sshll.u32 %s20, 4
      %s1663 = int_to_ptr.hbm [resolvable:$true] %s1662
      %1665 = dma.vmem_to_hbm [thread:$0]  %s1661, 32, %s1663, [#allocation3]
    $region85: #{sentiment_classifier_forward.1} parent=1 // pred_fallthru
      _
    // Predicated region
    $region86: #{sentiment_classifier_forward.1} parent=1 // pred_check
      _
    $region87: #{sentiment_classifier_forward.1} parent=1 // pred_check_branch
      %1667 = sbr.rel (0) target = $region89
    $region88: #{sentiment_classifier_forward.1} parent=1 // pred_region
      %1669 = dma.done [#allocation3], 32
    $region89: #{sentiment_classifier_forward.1} parent=1 // pred_fallthru
      _
    %1670 = vsyncpa [#allocation3], 1

</llo_original>
